<compile_context>
chip_gen: v6e
topology: v6e:2x2x1
jax: 0.10.0
libtpu: 0.0.40
codegen_flags: <defaults>
</compile_context>

<pallas_src>
import jax
import jax.numpy as jnp
import numpy as np
from jax.experimental import pallas as pl
from jax.experimental.pallas import tpu as pltpu


# ----------------------------------------------------------------------------
# Fused forward kernel: conv0+ReLU, conv1+ReLU, fc0+ReLU, fc1 for one batch
# block.  All intermediates stay in vregs/VMEM.
# ----------------------------------------------------------------------------
def _fused_forward_kernel(x_ref, w0_ref, b0_ref, w1_ref, b1_ref,
                          w2_ref, b2_ref, w3_ref, b3_ref, o_ref):
    """
    x_ref  : (H, NB, W*C_in)        f32   input block, row = (h, n), col = (w, c)
    w0_ref : (3, W*C_in,  W*C_mid)  bf16  conv0 block-banded weights (per ky)
    b0_ref : (1, W*C_mid)           f32
    w1_ref : (3, W*C_mid, W*C_mid)  bf16  conv1 block-banded weights
    b1_ref : (1, W*C_mid)           f32
    w2_ref : (H, W*C_mid, HID_PAD)  bf16  fc0 weights, columns in (h, w, c) order
    b2_ref : (1, HID_PAD)           f32
    w3_ref : (HID_PAD, OUT_PAD)     bf16  fc1 weights (pre-transposed)
    b3_ref : (1, OUT_PAD)           f32
    o_ref  : (NB, OUT_PAD)          f32
    """
    nb = o_ref.shape[0]              # samples in this block (multiple of 8)
    h_dim = x_ref.shape[0]           # H
    hn = h_dim * nb                  # rows in the activation slab

    def conv3x3_relu(act, wband_ref, bias_ref):
        # Vertical taps: aligned +/- nb sublane shift via static slice+concat;
        # the inserted zero block IS the vertical zero padding (no masks, no
        # shift matrices, no MXU work for the permutation).
        wc = act.shape[1]
        zrow = jnp.zeros((nb, wc), jnp.float32)
        up = jnp.concatenate([zrow, act[:hn - nb]], axis=0)    # act at h-1
        dn = jnp.concatenate([act[nb:], zrow], axis=0)         # act at h+1
        # Horizontal taps + horizontal zero padding are folded into the banded
        # weight: one dense K = W*Cin matmul per vertical tap.
        # bf16 operands, f32 accumulation (MXU-native on v5e/v6e/v7x).
        acc = jnp.dot(up.astype(jnp.bfloat16), wband_ref[0],
                      preferred_element_type=jnp.float32)
        acc += jnp.dot(act.astype(jnp.bfloat16), wband_ref[1],
                       preferred_element_type=jnp.float32)
        acc += jnp.dot(dn.astype(jnp.bfloat16), wband_ref[2],
                       preferred_element_type=jnp.float32)
        return jnp.maximum(acc + bias_ref[...], 0.0)           # bias + ReLU, f32

    x2d = x_ref[...].reshape(hn, x_ref.shape[2])               # (H*NB, W*Cin)
    a1 = conv3x3_relu(x2d, w0_ref, b0_ref)                     # (H*NB, 128) f32
    a2 = conv3x3_relu(a1, w1_ref, b1_ref)                      # (H*NB, 128) f32

    # fc0: torch Flatten + Linear.  The (h, w, c) flatten order is baked into
    # w2's columns at prep time, so here it is a trivial vreg-group reshape,
    # one batched matmul over h, and a cheap VPU sum over h.
    a2r = a2.reshape(h_dim, nb, a2.shape[1]).astype(jnp.bfloat16)
    part = jnp.einsum('hnk,hko->hno', a2r, w2_ref[...],
                      preferred_element_type=jnp.float32)      # (H, NB, HID_PAD)
    y = jnp.maximum(jnp.sum(part, axis=0) + b2_ref[...], 0.0)  # (NB, HID_PAD)

    # fc1: pre-transposed weight -> plain A @ B on the MXU; lane-dense
    # 128-wide output store (no masked partial stores).
    z = jnp.dot(y.astype(jnp.bfloat16), w3_ref[...],
                preferred_element_type=jnp.float32)
    o_ref[...] = (z + b3_ref[...]).astype(o_ref.dtype)


def _resident_spec(arr):
    """Full-array block that stays resident across the batch grid."""
    nd = arr.ndim
    return pl.BlockSpec(arr.shape, lambda i, _nd=nd: (0,) * _nd)


def my_torch_network_forward(x_nchw, prep, *, out_dim=10, block_batch=8):
    """Fused forward pass.  `prep` comes from prepare_params() (one-time)."""
    assert block_batch % 8 == 0, "batch block must be a multiple of 8 sublanes"
    n, c_in, h, w = x_nchw.shape
    n_pad = -(-n // block_batch) * block_batch          # round batch up
    out_pad = prep["w3"].shape[1]

    # NCHW -> (H, Npad, W, C) -> (H, Npad, W*C): rows grouped by image row h so
    # the vertical conv taps become aligned sublane shifts inside the kernel.
    # (Tiny at small batch; fold into the input BlockSpec only if batch is huge.)
    xp = jnp.pad(x_nchw, ((0, n_pad - n), (0, 0), (0, 0), (0, 0)))
    x3d = jnp.transpose(xp, (2, 0, 3, 1)).reshape(h, n_pad, w * c_in)

    grid = (n_pad // block_batch,)
    in_specs = [pl.BlockSpec((h, block_batch, w * c_in), lambda i: (0, i, 0))]
    in_specs += [_resident_spec(prep[k])
                 for k in ("w0", "b0", "w1", "b1", "w2", "b2", "w3", "b3")]

    out = pl.pallas_call(
        _fused_forward_kernel,
        out_shape=jax.ShapeDtypeStruct((n_pad, out_pad), jnp.float32),
        grid=grid,
        in_specs=in_specs,
        out_specs=pl.BlockSpec((block_batch, out_pad), lambda i: (i, 0)),
        compiler_params=pltpu.CompilerParams(
            dimension_semantics=("parallel",)),
    )(x3d, prep["w0"], prep["b0"], prep["w1"], prep["b1"],
      prep["w2"], prep["b2"], prep["w3"], prep["b3"])

    return out[:n, :out_dim]


# ----------------------------------------------------------------------------
# One-time parameter preparation (all re-layouts hoisted off the forward path,
# batch-size independent).
# ----------------------------------------------------------------------------
def prepare_params(params, *, height=16, width=16, lane_pad=128):
    c_mid, c_in = params["conv0_w"].shape[:2]
    hidden = params["fc0_w"].shape[0]
    out_dim = params["fc1_w"].shape[0]
    hidden_pad = max(lane_pad, -(-hidden // lane_pad) * lane_pad)
    out_pad = max(lane_pad, -(-out_dim // lane_pad) * lane_pad)

    def band_weights(w_oihw):
        # Block-banded weight per vertical tap ky:
        #   Wb[ky, win*cin + ci, wc*cout + co] = W[co, ci, ky, win - wc + 1]
        # (zero outside the band); horizontal zero padding is implicit.
        cout, cin = w_oihw.shape[:2]
        w_np = np.asarray(w_oihw, np.float32)
        wb = np.zeros((3, width * cin, width * cout), np.float32)
        for ky in range(3):
            for kx in range(3):
                blk = w_np[:, :, ky, kx].T                     # (cin, cout)
                for wc in range(width):
                    win = wc + kx - 1
                    if 0 <= win < width:
                        wb[ky, win * cin:(win + 1) * cin,
                               wc * cout:(wc + 1) * cout] = blk
        return jnp.asarray(wb, jnp.bfloat16)

    # fc0: permute columns once from torch's (c, h, w) flatten order to the
    # (h, w, c) order of the conv slab, split per h, pad hidden dim to 128.
    w2 = np.asarray(params["fc0_w"], np.float32).reshape(hidden, c_mid, height, width)
    w2p = np.transpose(w2, (2, 3, 1, 0)).reshape(height, width * c_mid, hidden)
    w2pad = np.zeros((height, width * c_mid, hidden_pad), np.float32)
    w2pad[:, :, :hidden] = w2p

    # fc1: pre-transpose to (HID_PAD, OUT_PAD).
    w3 = np.zeros((hidden_pad, out_pad), np.float32)
    w3[:hidden, :out_dim] = np.asarray(params["fc1_w"], np.float32).T

    b2 = np.zeros((1, hidden_pad), np.float32)
    b2[0, :hidden] = np.asarray(params["fc0_b"], np.float32)
    b3 = np.zeros((1, out_pad), np.float32)
    b3[0, :out_dim] = np.asarray(params["fc1_b"], np.float32)

    return {
        "w0": band_weights(params["conv0_w"]),
        "b0": jnp.asarray(np.tile(np.asarray(params["conv0_b"], np.float32),
                                  width).reshape(1, width * c_mid)),
        "w1": band_weights(params["conv1_w"]),
        "b1": jnp.asarray(np.tile(np.asarray(params["conv1_b"], np.float32),
                                  width).reshape(1, width * c_mid)),
        "w2": jnp.asarray(w2pad, jnp.bfloat16),
        "b2": jnp.asarray(b2),
        "w3": jnp.asarray(w3, jnp.bfloat16),
        "b3": jnp.asarray(b3),
    }


# ----------------------------------------------------------------------------
# Torch-layout parameters + plain-JAX reference (mirrors MyTorchNetwork).
# ----------------------------------------------------------------------------
def init_params(key):
    C_IN, C_MID, H, W = 4, 8, 16, 16
    HIDDEN, OUT = 32, 10
    ks = jax.random.split(key, 8)
    scale = 0.1
    return {
        "conv0_w": scale * jax.random.normal(ks[0], (C_MID, C_IN, 3, 3), jnp.float32),
        "conv0_b": scale * jax.random.normal(ks[1], (C_MID,), jnp.float32),
        "conv1_w": scale * jax.random.normal(ks[2], (C_MID, C_MID, 3, 3), jnp.float32),
        "conv1_b": scale * jax.random.normal(ks[3], (C_MID,), jnp.float32),
        "fc0_w": scale * jax.random.normal(ks[4], (HIDDEN, C_MID * H * W), jnp.float32),
        "fc0_b": scale * jax.random.normal(ks[5], (HIDDEN,), jnp.float32),
        "fc1_w": scale * jax.random.normal(ks[6], (OUT, HIDDEN), jnp.float32),
        "fc1_b": scale * jax.random.normal(ks[7], (OUT,), jnp.float32),
    }


def reference_forward(x_nchw, params):
    hp = jax.lax.Precision.HIGHEST

    def conv(x, w, b):
        y = jax.lax.conv_general_dilated(
            x, w, window_strides=(1, 1), padding=((1, 1), (1, 1)),
            dimension_numbers=("NCHW", "OIHW", "NCHW"), precision=hp)
        return jax.nn.relu(y + b[None, :, None, None])

    h = conv(x_nchw, params["conv0_w"], params["conv0_b"])
    h = conv(h, params["conv1_w"], params["conv1_b"])
    h = h.reshape(h.shape[0], -1)                      # torch (C,H,W) flatten
    h = jax.nn.relu(jnp.dot(h, params["fc0_w"].T, precision=hp) + params["fc0_b"])
    return jnp.dot(h, params["fc1_w"].T, precision=hp) + params["fc1_b"]


if __name__ == "__main__":
    key = jax.random.PRNGKey(0)
    k_x, k_p = jax.random.split(key)
    x = jax.random.normal(k_x, (2, 4, 16, 16), jnp.float32)   # NCHW, like PyTorch
    params = init_params(k_p)

    prep = prepare_params(params)                              # one-time, batch-independent

    fwd = jax.jit(my_torch_network_forward,
                  static_argnames=("out_dim", "block_batch"))
    out = jax.block_until_ready(fwd(x, prep, out_dim=10))

    assert out.shape == (2, 10), out.shape
    assert out.dtype == jnp.float32

    # Numerical check against the plain-JAX equivalent of the torch module.
    # Tolerance is set for bf16 matmul operands (f32 accumulation); expected
    # error at these magnitudes is ~5e-3.
    ref = jax.block_until_ready(jax.jit(reference_forward)(x, params))
    np.testing.assert_allclose(np.asarray(out), np.asarray(ref),
                               rtol=2e-2, atol=2e-2)

    print("KERNEL_OK")
</pallas_src>

<mosaic_0001>
module attributes {stable_mosaic.version = 11 : i64} {
  func.func @_fused_forward_kernel(%arg0: i32, %arg1: memref<16x8x64xf32, #tpu.memory_space<vmem>>, %arg2: memref<3x64x128xbf16, #tpu.memory_space<vmem>>, %arg3: memref<1x128xf32, #tpu.memory_space<vmem>>, %arg4: memref<3x128x128xbf16, #tpu.memory_space<vmem>>, %arg5: memref<1x128xf32, #tpu.memory_space<vmem>>, %arg6: memref<16x128x128xbf16, #tpu.memory_space<vmem>>, %arg7: memref<1x128xf32, #tpu.memory_space<vmem>>, %arg8: memref<128x128xbf16, #tpu.memory_space<vmem>>, %arg9: memref<1x128xf32, #tpu.memory_space<vmem>>, %arg10: memref<8x128xf32, #tpu.memory_space<vmem>>) attributes {dimension_semantics = [#tpu.dimension_semantics<parallel>], iteration_bounds = array<i64: 1>, scalar_prefetch = 0 : i64, scratch_operands = 0 : i64, tpu.core_type = #tpu.core_type<tc>, window_params = [{transform_indices = @transform_0, window_bounds = array<i64: 16, 8, 64>}, {pipeline_mode = #tpu.pipeline_mode<synchronous>, transform_indices = @transform_1, window_bounds = array<i64: 3, 64, 128>}, {pipeline_mode = #tpu.pipeline_mode<synchronous>, transform_indices = @transform_2, window_bounds = array<i64: 1, 128>}, {pipeline_mode = #tpu.pipeline_mode<synchronous>, transform_indices = @transform_3, window_bounds = array<i64: 3, 128, 128>}, {pipeline_mode = #tpu.pipeline_mode<synchronous>, transform_indices = @transform_4, window_bounds = array<i64: 1, 128>}, {pipeline_mode = #tpu.pipeline_mode<synchronous>, transform_indices = @transform_5, window_bounds = array<i64: 16, 128, 128>}, {pipeline_mode = #tpu.pipeline_mode<synchronous>, transform_indices = @transform_6, window_bounds = array<i64: 1, 128>}, {pipeline_mode = #tpu.pipeline_mode<synchronous>, transform_indices = @transform_7, window_bounds = array<i64: 128, 128>}, {pipeline_mode = #tpu.pipeline_mode<synchronous>, transform_indices = @transform_8, window_bounds = array<i64: 1, 128>}, {transform_indices = @transform_9, window_bounds = array<i64: 8, 128>}]} {
    %c0 = arith.constant 0 : index
    %c0_0 = arith.constant 0 : index
    %c0_1 = arith.constant 0 : index
    %0 = vector.load %arg1[%c0, %c0_0, %c0_1] : memref<16x8x64xf32, #tpu.memory_space<vmem>>, vector<16x8x64xf32>
    %1 = vector.shape_cast %0 : vector<16x8x64xf32> to vector<128x64xf32>
    %cst = arith.constant 0.000000e+00 : f32
    %2 = vector.broadcast %cst : f32 to vector<8x64xf32>
    %3 = vector.extract_strided_slice %1 {offsets = [0, 0], sizes = [120, 64], strides = [1, 1]} : vector<128x64xf32> to vector<120x64xf32>
    %4 = tpu.concatenate %2, %3 in 0 : vector<8x64xf32>, vector<120x64xf32> -> vector<128x64xf32>
    %5 = vector.extract_strided_slice %1 {offsets = [8, 0], sizes = [120, 64], strides = [1, 1]} : vector<128x64xf32> to vector<120x64xf32>
    %6 = tpu.concatenate %5, %2 in 0 : vector<120x64xf32>, vector<8x64xf32> -> vector<128x64xf32>
    %7 = arith.truncf %4 : vector<128x64xf32> to vector<128x64xbf16>
    %c0_2 = arith.constant 0 : index
    %c0_3 = arith.constant 0 : index
    %c0_4 = arith.constant 0 : index
    %8 = vector.load %arg2[%c0_2, %c0_3, %c0_4] : memref<3x64x128xbf16, #tpu.memory_space<vmem>>, vector<1x64x128xbf16>
    %9 = vector.shape_cast %8 : vector<1x64x128xbf16> to vector<64x128xbf16>
    %cst_5 = arith.constant dense<0.000000e+00> : vector<128x128xf32>
    %10 = tpu.matmul %7, %9, %cst_5 {dimension_numbers = #tpu.dot_dimension_numbers<[1], [0], [0], [1], [0, 0, 1, 1], [], []>} : vector<128x64xbf16>, vector<64x128xbf16>, vector<128x128xf32> -> vector<128x128xf32>
    %11 = arith.truncf %1 : vector<128x64xf32> to vector<128x64xbf16>
    %c1 = arith.constant 1 : index
    %c0_6 = arith.constant 0 : index
    %c0_7 = arith.constant 0 : index
    %12 = vector.load %arg2[%c1, %c0_6, %c0_7] : memref<3x64x128xbf16, #tpu.memory_space<vmem>>, vector<1x64x128xbf16>
    %13 = vector.shape_cast %12 : vector<1x64x128xbf16> to vector<64x128xbf16>
    %cst_8 = arith.constant dense<0.000000e+00> : vector<128x128xf32>
    %14 = tpu.matmul %11, %13, %cst_8 {dimension_numbers = #tpu.dot_dimension_numbers<[1], [0], [0], [1], [0, 0, 1, 1], [], []>} : vector<128x64xbf16>, vector<64x128xbf16>, vector<128x128xf32> -> vector<128x128xf32>
    %15 = arith.addf %10, %14 : vector<128x128xf32>
    %16 = arith.truncf %6 : vector<128x64xf32> to vector<128x64xbf16>
    %c2 = arith.constant 2 : index
    %c0_9 = arith.constant 0 : index
    %c0_10 = arith.constant 0 : index
    %17 = vector.load %arg2[%c2, %c0_9, %c0_10] : memref<3x64x128xbf16, #tpu.memory_space<vmem>>, vector<1x64x128xbf16>
    %18 = vector.shape_cast %17 : vector<1x64x128xbf16> to vector<64x128xbf16>
    %cst_11 = arith.constant dense<0.000000e+00> : vector<128x128xf32>
    %19 = tpu.matmul %16, %18, %cst_11 {dimension_numbers = #tpu.dot_dimension_numbers<[1], [0], [0], [1], [0, 0, 1, 1], [], []>} : vector<128x64xbf16>, vector<64x128xbf16>, vector<128x128xf32> -> vector<128x128xf32>
    %20 = arith.addf %15, %19 : vector<128x128xf32>
    %c0_12 = arith.constant 0 : index
    %c0_13 = arith.constant 0 : index
    %21 = vector.load %arg3[%c0_12, %c0_13] : memref<1x128xf32, #tpu.memory_space<vmem>>, vector<1x128xf32>
    %22 = vector.broadcast %21 : vector<1x128xf32> to vector<128x128xf32>
    %23 = arith.addf %20, %22 : vector<128x128xf32>
    %cst_14 = arith.constant 0.000000e+00 : f32
    %24 = vector.broadcast %cst_14 : f32 to vector<128x128xf32>
    %25 = arith.maximumf %23, %24 : vector<128x128xf32>
    %cst_15 = arith.constant 0.000000e+00 : f32
    %26 = vector.broadcast %cst_15 : f32 to vector<8x128xf32>
    %27 = vector.extract_strided_slice %25 {offsets = [0, 0], sizes = [120, 128], strides = [1, 1]} : vector<128x128xf32> to vector<120x128xf32>
    %28 = tpu.concatenate %26, %27 in 0 : vector<8x128xf32>, vector<120x128xf32> -> vector<128x128xf32>
    %29 = vector.extract_strided_slice %25 {offsets = [8, 0], sizes = [120, 128], strides = [1, 1]} : vector<128x128xf32> to vector<120x128xf32>
    %30 = tpu.concatenate %29, %26 in 0 : vector<120x128xf32>, vector<8x128xf32> -> vector<128x128xf32>
    %31 = arith.truncf %28 : vector<128x128xf32> to vector<128x128xbf16>
    %c0_16 = arith.constant 0 : index
    %c0_17 = arith.constant 0 : index
    %c0_18 = arith.constant 0 : index
    %32 = vector.load %arg4[%c0_16, %c0_17, %c0_18] : memref<3x128x128xbf16, #tpu.memory_space<vmem>>, vector<1x128x128xbf16>
    %33 = vector.shape_cast %32 : vector<1x128x128xbf16> to vector<128x128xbf16>
    %cst_19 = arith.constant dense<0.000000e+00> : vector<128x128xf32>
    %34 = tpu.matmul %31, %33, %cst_19 {dimension_numbers = #tpu.dot_dimension_numbers<[1], [0], [0], [1], [0, 0, 1, 1], [], []>} : vector<128x128xbf16>, vector<128x128xbf16>, vector<128x128xf32> -> vector<128x128xf32>
    %35 = arith.truncf %25 : vector<128x128xf32> to vector<128x128xbf16>
    %c1_20 = arith.constant 1 : index
    %c0_21 = arith.constant 0 : index
    %c0_22 = arith.constant 0 : index
    %36 = vector.load %arg4[%c1_20, %c0_21, %c0_22] : memref<3x128x128xbf16, #tpu.memory_space<vmem>>, vector<1x128x128xbf16>
    %37 = vector.shape_cast %36 : vector<1x128x128xbf16> to vector<128x128xbf16>
    %cst_23 = arith.constant dense<0.000000e+00> : vector<128x128xf32>
    %38 = tpu.matmul %35, %37, %cst_23 {dimension_numbers = #tpu.dot_dimension_numbers<[1], [0], [0], [1], [0, 0, 1, 1], [], []>} : vector<128x128xbf16>, vector<128x128xbf16>, vector<128x128xf32> -> vector<128x128xf32>
    %39 = arith.addf %34, %38 : vector<128x128xf32>
    %40 = arith.truncf %30 : vector<128x128xf32> to vector<128x128xbf16>
    %c2_24 = arith.constant 2 : index
    %c0_25 = arith.constant 0 : index
    %c0_26 = arith.constant 0 : index
    %41 = vector.load %arg4[%c2_24, %c0_25, %c0_26] : memref<3x128x128xbf16, #tpu.memory_space<vmem>>, vector<1x128x128xbf16>
    %42 = vector.shape_cast %41 : vector<1x128x128xbf16> to vector<128x128xbf16>
    %cst_27 = arith.constant dense<0.000000e+00> : vector<128x128xf32>
    %43 = tpu.matmul %40, %42, %cst_27 {dimension_numbers = #tpu.dot_dimension_numbers<[1], [0], [0], [1], [0, 0, 1, 1], [], []>} : vector<128x128xbf16>, vector<128x128xbf16>, vector<128x128xf32> -> vector<128x128xf32>
    %44 = arith.addf %39, %43 : vector<128x128xf32>
    %c0_28 = arith.constant 0 : index
    %c0_29 = arith.constant 0 : index
    %45 = vector.load %arg5[%c0_28, %c0_29] : memref<1x128xf32, #tpu.memory_space<vmem>>, vector<1x128xf32>
    %46 = vector.broadcast %45 : vector<1x128xf32> to vector<128x128xf32>
    %47 = arith.addf %44, %46 : vector<128x128xf32>
    %cst_30 = arith.constant 0.000000e+00 : f32
    %48 = vector.broadcast %cst_30 : f32 to vector<128x128xf32>
    %49 = arith.maximumf %47, %48 : vector<128x128xf32>
    %50 = vector.shape_cast %49 : vector<128x128xf32> to vector<16x8x128xf32>
    %51 = arith.truncf %50 : vector<16x8x128xf32> to vector<16x8x128xbf16>
    %c0_31 = arith.constant 0 : index
    %c0_32 = arith.constant 0 : index
    %c0_33 = arith.constant 0 : index
    %52 = vector.load %arg6[%c0_31, %c0_32, %c0_33] : memref<16x128x128xbf16, #tpu.memory_space<vmem>>, vector<16x128x128xbf16>
    "tpu.trace_start"() <{level = 10 : i32, message = "hnk,hko->hno"}> : () -> ()
    %cst_34 = arith.constant dense<0.000000e+00> : vector<16x8x128xf32>
    %53 = tpu.matmul %51, %52, %cst_34 {dimension_numbers = #tpu.dot_dimension_numbers<[2], [1], [1], [2], [0, 0, 0, 1, 1, 2], [0], [0]>} : vector<16x8x128xbf16>, vector<16x128x128xbf16>, vector<16x8x128xf32> -> vector<16x8x128xf32>
    "tpu.trace_stop"() : () -> ()
    %cst_35 = arith.constant dense<0.000000e+00> : vector<8x128xf32>
    %54 = vector.multi_reduction <add>, %53, %cst_35 [0] : vector<16x8x128xf32> to vector<8x128xf32>
    %c0_36 = arith.constant 0 : index
    %c0_37 = arith.constant 0 : index
    %55 = vector.load %arg7[%c0_36, %c0_37] : memref<1x128xf32, #tpu.memory_space<vmem>>, vector<1x128xf32>
    %56 = vector.broadcast %55 : vector<1x128xf32> to vector<8x128xf32>
    %57 = arith.addf %54, %56 : vector<8x128xf32>
    %cst_38 = arith.constant 0.000000e+00 : f32
    %58 = vector.broadcast %cst_38 : f32 to vector<8x128xf32>
    %59 = arith.maximumf %57, %58 : vector<8x128xf32>
    %60 = arith.truncf %59 : vector<8x128xf32> to vector<8x128xbf16>
    %c0_39 = arith.constant 0 : index
    %c0_40 = arith.constant 0 : index
    %61 = vector.load %arg8[%c0_39, %c0_40] : memref<128x128xbf16, #tpu.memory_space<vmem>>, vector<128x128xbf16>
    %cst_41 = arith.constant dense<0.000000e+00> : vector<8x128xf32>
    %62 = tpu.matmul %60, %61, %cst_41 {dimension_numbers = #tpu.dot_dimension_numbers<[1], [0], [0], [1], [0, 0, 1, 1], [], []>} : vector<8x128xbf16>, vector<128x128xbf16>, vector<8x128xf32> -> vector<8x128xf32>
    %c0_42 = arith.constant 0 : index
    %c0_43 = arith.constant 0 : index
    %63 = vector.load %arg9[%c0_42, %c0_43] : memref<1x128xf32, #tpu.memory_space<vmem>>, vector<1x128xf32>
    %64 = vector.broadcast %63 : vector<1x128xf32> to vector<8x128xf32>
    %65 = arith.addf %62, %64 : vector<8x128xf32>
    %c0_44 = arith.constant 0 : index
    %c0_45 = arith.constant 0 : index
    %66 = vector.load %arg10[%c0_44, %c0_45] : memref<8x128xf32, #tpu.memory_space<vmem>>, vector<8x128xf32>
    tpu.vector_store %arg10[%c0_44, %c0_45], %65 {strides = array<i32>} : memref<8x128xf32, #tpu.memory_space<vmem>>, vector<8x128xf32>,
    return
  }
  func.func @transform_0(%arg0: i32) -> (i32, i32, i32) {
    %c0_i32 = arith.constant 0 : i32
    %c0_i32_0 = arith.constant 0 : i32
    %c0_i32_1 = arith.constant 0 : i32
    return %c0_i32, %arg0, %c0_i32_0 : i32, i32, i32
  }
  func.func @transform_1(%arg0: i32) -> (i32, i32, i32) {
    %c0_i32 = arith.constant 0 : i32
    %c0_i32_0 = arith.constant 0 : i32
    %c0_i32_1 = arith.constant 0 : i32
    %c0_i32_2 = arith.constant 0 : i32
    return %c0_i32, %c0_i32_0, %c0_i32_1 : i32, i32, i32
  }
  func.func @transform_2(%arg0: i32) -> (i32, i32) {
    %c0_i32 = arith.constant 0 : i32
    %c0_i32_0 = arith.constant 0 : i32
    %c0_i32_1 = arith.constant 0 : i32
    return %c0_i32, %c0_i32_0 : i32, i32
  }
  func.func @transform_3(%arg0: i32) -> (i32, i32, i32) {
    %c0_i32 = arith.constant 0 : i32
    %c0_i32_0 = arith.constant 0 : i32
    %c0_i32_1 = arith.constant 0 : i32
    %c0_i32_2 = arith.constant 0 : i32
    return %c0_i32, %c0_i32_0, %c0_i32_1 : i32, i32, i32
  }
  func.func @transform_4(%arg0: i32) -> (i32, i32) {
    %c0_i32 = arith.constant 0 : i32
    %c0_i32_0 = arith.constant 0 : i32
    %c0_i32_1 = arith.constant 0 : i32
    return %c0_i32, %c0_i32_0 : i32, i32
  }
  func.func @transform_5(%arg0: i32) -> (i32, i32, i32) {
    %c0_i32 = arith.constant 0 : i32
    %c0_i32_0 = arith.constant 0 : i32
    %c0_i32_1 = arith.constant 0 : i32
    %c0_i32_2 = arith.constant 0 : i32
    return %c0_i32, %c0_i32_0, %c0_i32_1 : i32, i32, i32
  }
  func.func @transform_6(%arg0: i32) -> (i32, i32) {
    %c0_i32 = arith.constant 0 : i32
    %c0_i32_0 = arith.constant 0 : i32
    %c0_i32_1 = arith.constant 0 : i32
    return %c0_i32, %c0_i32_0 : i32, i32
  }
  func.func @transform_7(%arg0: i32) -> (i32, i32) {
    %c0_i32 = arith.constant 0 : i32
    %c0_i32_0 = arith.constant 0 : i32
    %c0_i32_1 = arith.constant 0 : i32
    return %c0_i32, %c0_i32_0 : i32, i32
  }
  func.func @transform_8(%arg0: i32) -> (i32, i32) {
    %c0_i32 = arith.constant 0 : i32
    %c0_i32_0 = arith.constant 0 : i32
    %c0_i32_1 = arith.constant 0 : i32
    return %c0_i32, %c0_i32_0 : i32, i32
  }
  func.func @transform_9(%arg0: i32) -> (i32, i32) {
    %c0_i32 = arith.constant 0 : i32
    %c0_i32_0 = arith.constant 0 : i32
    return %arg0, %c0_i32 : i32, i32
  }
}

</mosaic_0001>

<llo_original>
// kernel: my_torch_network_forward.1
$region0: #{my_torch_network_forward.1}
  #allocation0 [shape = 'u32[]', space=smem, size = 0x4, offset = 0x4, fixed_abs, tag = 'smem constant byte address 0x4 - core index']
  #allocation1 [shape = 'u32[144,128]{1,0:T(1,128)}', space=vmem, size = 0x12000, scoped, tag = 'internal scratch']
  %s0 = inlined_call_operand.vmem [shape: f32[16,8,64], index: 0, kind: input, shape index: {}]
  %s1 = inlined_call_operand.vmem [shape: bf16[3,64,128], index: 1, kind: input, shape index: {}]
  %s2 = inlined_call_operand.vmem [shape: f32[1,128], index: 2, kind: input, shape index: {}]
  %s3 = inlined_call_operand.vmem [shape: bf16[3,128,128], index: 3, kind: input, shape index: {}]
  %s4 = inlined_call_operand.vmem [shape: f32[1,128], index: 4, kind: input, shape index: {}]
  %s5 = inlined_call_operand.vmem [shape: bf16[16,128,128], index: 5, kind: input, shape index: {}]
  %s6 = inlined_call_operand.vmem [shape: f32[1,128], index: 6, kind: input, shape index: {}]
  %s7 = inlined_call_operand.vmem [shape: bf16[128,128], index: 7, kind: input, shape index: {}]
  %s8 = inlined_call_operand.vmem [shape: f32[1,128], index: 8, kind: input, shape index: {}]
  %s9 = inlined_call_operand.vmem [shape: f32[8,128], index: 9, kind: output, shape index: {}]
  %s10 = sld [smem:[#allocation0]]
  $region46: #{my_torch_network_forward.1} parent=0
    _
  %s12 = ssub.s32 1, %s10
  %s13 = scalar_select 0, %s12, %s10
  // Predicated region
  $region2: #{my_torch_network_forward.1} parent=0 // pred_check
    _
  $region3: #{my_torch_network_forward.1} parent=0 // pred_check_branch
    %15 = sbr.rel (0) target = $region5
  $region4: #{my_torch_network_forward.1} parent=0 // pred_region
    _
  $region5: #{my_torch_network_forward.1} parent=0 // pred_fallthru
    _
  // Predicated region
  $region6: #{my_torch_network_forward.1} parent=0 // pred_check
    _
  $region7: #{my_torch_network_forward.1} parent=0 // pred_check_branch
    %17 = sbr.rel (0) target = $region9
  $region8: #{my_torch_network_forward.1} parent=0 // pred_region
    _
  $region9: #{my_torch_network_forward.1} parent=0 // pred_fallthru
    _
  // Predicated region
  $region10: #{my_torch_network_forward.1} parent=0 // pred_check
    _
  $region11: #{my_torch_network_forward.1} parent=0 // pred_check_branch
    %19 = sbr.rel (0) target = $region13
  $region12: #{my_torch_network_forward.1} parent=0 // pred_region
    _
  $region13: #{my_torch_network_forward.1} parent=0 // pred_fallthru
    _
  // Predicated region
  $region14: #{my_torch_network_forward.1} parent=0 // pred_check
    _
  $region15: #{my_torch_network_forward.1} parent=0 // pred_check_branch
    %21 = sbr.rel (0) target = $region17
  $region16: #{my_torch_network_forward.1} parent=0 // pred_region
    _
  $region17: #{my_torch_network_forward.1} parent=0 // pred_fallthru
    _
  // Predicated region
  $region18: #{my_torch_network_forward.1} parent=0 // pred_check
    _
  $region19: #{my_torch_network_forward.1} parent=0 // pred_check_branch
    %23 = sbr.rel (0) target = $region21
  $region20: #{my_torch_network_forward.1} parent=0 // pred_region
    _
  $region21: #{my_torch_network_forward.1} parent=0 // pred_fallthru
    _
  // Predicated region
  $region22: #{my_torch_network_forward.1} parent=0 // pred_check
    _
  $region23: #{my_torch_network_forward.1} parent=0 // pred_check_branch
    %25 = sbr.rel (0) target = $region25
  $region24: #{my_torch_network_forward.1} parent=0 // pred_region
    _
  $region25: #{my_torch_network_forward.1} parent=0 // pred_fallthru
    _
  // Predicated region
  $region26: #{my_torch_network_forward.1} parent=0 // pred_check
    _
  $region27: #{my_torch_network_forward.1} parent=0 // pred_check_branch
    %27 = sbr.rel (0) target = $region29
  $region28: #{my_torch_network_forward.1} parent=0 // pred_region
    _
  $region29: #{my_torch_network_forward.1} parent=0 // pred_fallthru
    _
  // Predicated region
  $region30: #{my_torch_network_forward.1} parent=0 // pred_check
    _
  $region31: #{my_torch_network_forward.1} parent=0 // pred_check_branch
    %29 = sbr.rel (0) target = $region33
  $region32: #{my_torch_network_forward.1} parent=0 // pred_region
    _
  $region33: #{my_torch_network_forward.1} parent=0 // pred_fallthru
    _
  // Predicated region
  $region34: #{my_torch_network_forward.1} parent=0 // pred_check
    _
  $region35: #{my_torch_network_forward.1} parent=0 // pred_check_branch
    %31 = sbr.rel (0) target = $region37
  $region36: #{my_torch_network_forward.1} parent=0 // pred_region
    _
  $region37: #{my_torch_network_forward.1} parent=0 // pred_fallthru
    _
  %v33 = vld [vmem:[%s0] sm:$0xff]
  %v34 = vld [vmem:[%s0 + $0x8] sm:$0xff]
  %v35 = vld [vmem:[%s0 + $0x10] sm:$0xff]
  %v36 = vld [vmem:[%s0 + $0x18] sm:$0xff]
  %v37 = vld [vmem:[%s0 + $0x20] sm:$0xff]
  %v38 = vld [vmem:[%s0 + $0x28] sm:$0xff]
  %v39 = vld [vmem:[%s0 + $0x30] sm:$0xff]
  %v40 = vld [vmem:[%s0 + $0x38] sm:$0xff]
  %v41 = vld [vmem:[%s0 + $0x40] sm:$0xff]
  %v42 = vld [vmem:[%s0 + $0x48] sm:$0xff]
  %v43 = vld [vmem:[%s0 + $0x50] sm:$0xff]
  %v44 = vld [vmem:[%s0 + $0x58] sm:$0xff]
  %v45 = vld [vmem:[%s0 + $0x60] sm:$0xff]
  %v46 = vld [vmem:[%s0 + $0x68] sm:$0xff]
  %v47 = vld [vmem:[%s0 + $0x70] sm:$0xff]
  %v48 = vld [vmem:[%s0 + $0x78] sm:$0xff]
  %v49 = vpack.c.bf16 %v33, 0.0
  %v50 = vpack.c.bf16 %v35, %v34
  %v51 = vpack.c.bf16 %v37, %v36
  %v52 = vpack.c.bf16 %v39, %v38
  %v53 = vpack.c.bf16 %v41, %v40
  %v54 = vpack.c.bf16 %v43, %v42
  %v55 = vpack.c.bf16 %v45, %v44
  %v56 = vpack.c.bf16 %v47, %v46
  %v57 = vld [vmem:[%s1] sm:$0xf]
  %v58 = vld [vmem:[%s1 + $0x4] sm:$0xf]
  %v59 = vld [vmem:[%s1 + $0x8] sm:$0xf]
  %v60 = vld [vmem:[%s1 + $0xc] sm:$0xf]
  %v61 = vld [vmem:[%s1 + $0x10] sm:$0xf]
  %v62 = vld [vmem:[%s1 + $0x14] sm:$0xf]
  %v63 = vld [vmem:[%s1 + $0x18] sm:$0xf]
  %v64 = vld [vmem:[%s1 + $0x1c] sm:$0xf]
  %v65 = vpack.c.bf16 %v34, %v33
  %v66 = vpack.c.bf16 %v36, %v35
  %v67 = vpack.c.bf16 %v38, %v37
  %v68 = vpack.c.bf16 %v40, %v39
  %v69 = vpack.c.bf16 %v42, %v41
  %v70 = vpack.c.bf16 %v44, %v43
  %v71 = vpack.c.bf16 %v46, %v45
  %v72 = vpack.c.bf16 %v48, %v47
  %s73 = scalar_lea.vmem %s1, 32
  %v74 = vld [vmem:[%s73] sm:$0xf]
  %v75 = vld [vmem:[%s73 + $0x4] sm:$0xf]
  %v76 = vld [vmem:[%s73 + $0x8] sm:$0xf]
  %v77 = vld [vmem:[%s73 + $0xc] sm:$0xf]
  %v78 = vld [vmem:[%s73 + $0x10] sm:$0xf]
  %v79 = vld [vmem:[%s73 + $0x14] sm:$0xf]
  %v80 = vld [vmem:[%s73 + $0x18] sm:$0xf]
  %v81 = vld [vmem:[%s73 + $0x1c] sm:$0xf]
  %v90 = vunpack.c.l.b16 %v74
  %v91 = vunpack.c.l.b16 %v75
  %v92 = vunpack.c.l.b16 %v76
  %v93 = vunpack.c.l.b16 %v77
  %v94 = vunpack.c.l.b16 %v78
  %v95 = vunpack.c.l.b16 %v79
  %v96 = vunpack.c.l.b16 %v80
  %v97 = vunpack.c.l.b16 %v81
  %v98 = vpack.c.b16 %v91, %v90
  %v99 = vpack.c.b16 %v93, %v92
  %v100 = vpack.c.b16 %v95, %v94
  %v101 = vpack.c.b16 %v97, %v96
  %vm106 = vcmask 523264
  %v108 = vsel %vm106, %v65, 0
  %v111 = vsel %vm106, %v66, 0
  %v114 = vsel %vm106, %v67, 0
  %v117 = vsel %vm106, %v68, 0
  %v120 = vsel %vm106, %v69, 0
  %v123 = vsel %vm106, %v70, 0
  %v126 = vsel %vm106, %v71, 0
  %v129 = vsel %vm106, %v72, 0
  %131 = vmatprep.subr.bf16.mxu0 0
  %132 = vmatpush1.bf16.msra.mxu0 0
  %133 = vmatprep.subr.bf16.mxu0 0
  %134 = vmatpush1.bf16.msra.mxu0 0
  %135 = vmatprep.subr.bf16.mxu0 0
  %136 = vmatpush1.bf16.msra.mxu0 0
  %137 = vmatprep.subr.bf16.mxu0 0
  %138 = vmatpush1.bf16.msra.mxu0 0
  %139 = vmatprep.subr.bf16.mxu0 0
  %140 = vmatpush1.bf16.msra.mxu0 %v101
  %141 = vmatprep.subr.bf16.mxu0 0
  %142 = vmatpush1.bf16.msra.mxu0 %v100
  %143 = vmatprep.subr.bf16.mxu0 0
  %144 = vmatpush1.bf16.msra.mxu0 %v99
  %145 = vmatprep.subr.bf16.mxu0 0
  %146 = vmatpush1.bf16.msra.mxu0 %v98
  %147 = vmatprep.subr.bf16.mxu0 0
  %148 = vmatpush2.bf16.msra.mxu0 0
  %149 = vmatprep.subr.bf16.mxu0 0
  %150 = vmatpush2.bf16.msra.mxu0 0
  %151 = vmatprep.subr.bf16.mxu0 0
  %152 = vmatpush2.bf16.msra.mxu0 0
  %153 = vmatprep.subr.bf16.mxu0 0
  %154 = vmatpush2.bf16.msra.mxu0 0
  %155 = vmatprep.subr.bf16.mxu0 0
  %156 = vmatpush2.bf16.msra.mxu0 0
  %157 = vmatprep.subr.bf16.mxu0 0
  %158 = vmatpush2.bf16.msra.mxu0 0
  %159 = vmatprep.subr.bf16.mxu0 0
  %160 = vmatpush2.bf16.msra.mxu0 0
  %161 = vmatprep.subr.bf16.mxu0 0
  %162 = vmatpush2.bf16.msra.mxu0 0
  %163 = vmatprep.mubr.bf16.mxu0 0
  %164 = vmatmul.mubr.bf16.gmra.mxu0 %v108
  %v165 = vpop.f32.mrf.mxu0
  %v166 = vadd.f32 0.0, %v165
  %v167 = vpop.f32.mrf.mxu0
  %v168 = vpop.f32.mrf.mxu0
  %v169 = vadd.f32 0.0, %v168
  %v170 = vpop.f32.mrf.mxu0
  %171 = vmatprep.mubr.bf16.mxu0 0
  %172 = vmatmul.mubr.bf16.gmra.mxu0 %v111
  %v173 = vpop.f32.mrf.mxu0
  %v174 = vadd.f32 0.0, %v173
  %v175 = vpop.f32.mrf.mxu0
  %v176 = vpop.f32.mrf.mxu0
  %v177 = vadd.f32 0.0, %v176
  %v178 = vpop.f32.mrf.mxu0
  %179 = vmatprep.mubr.bf16.mxu0 0
  %180 = vmatmul.mubr.bf16.gmra.mxu0 %v114
  %v181 = vpop.f32.mrf.mxu0
  %v182 = vadd.f32 0.0, %v181
  %v183 = vpop.f32.mrf.mxu0
  %v184 = vpop.f32.mrf.mxu0
  %v185 = vadd.f32 0.0, %v184
  %v186 = vpop.f32.mrf.mxu0
  %187 = vmatprep.mubr.bf16.mxu0 0
  %188 = vmatmul.mubr.bf16.gmra.mxu0 %v117
  %v189 = vpop.f32.mrf.mxu0
  %v190 = vadd.f32 0.0, %v189
  %v191 = vpop.f32.mrf.mxu0
  %v192 = vpop.f32.mrf.mxu0
  %v193 = vadd.f32 0.0, %v192
  %v194 = vpop.f32.mrf.mxu0
  %195 = vmatprep.mubr.bf16.mxu0 0
  %196 = vmatmul.mubr.bf16.gmra.mxu0 %v120
  %v197 = vpop.f32.mrf.mxu0
  %v198 = vadd.f32 0.0, %v197
  %v199 = vpop.f32.mrf.mxu0
  %v200 = vpop.f32.mrf.mxu0
  %v201 = vadd.f32 0.0, %v200
  %v202 = vpop.f32.mrf.mxu0
  %203 = vmatprep.mubr.bf16.mxu0 0
  %204 = vmatmul.mubr.bf16.gmra.mxu0 %v123
  %v205 = vpop.f32.mrf.mxu0
  %v206 = vadd.f32 0.0, %v205
  %v207 = vpop.f32.mrf.mxu0
  %v208 = vpop.f32.mrf.mxu0
  %v209 = vadd.f32 0.0, %v208
  %v210 = vpop.f32.mrf.mxu0
  %211 = vmatprep.mubr.bf16.mxu0 0
  %212 = vmatmul.mubr.bf16.gmra.mxu0 %v126
  %v213 = vpop.f32.mrf.mxu0
  %v214 = vadd.f32 0.0, %v213
  %v215 = vpop.f32.mrf.mxu0
  %v216 = vpop.f32.mrf.mxu0
  %v217 = vadd.f32 0.0, %v216
  %v218 = vpop.f32.mrf.mxu0
  %219 = vmatprep.mubr.bf16.mxu0 0
  %220 = vmatmul.mubr.bf16.gmra.mxu0 %v129
  %v221 = vpop.f32.mrf.mxu0
  %v222 = vadd.f32 0.0, %v221
  %v223 = vpop.f32.mrf.mxu0
  %v224 = vpop.f32.mrf.mxu0
  %v225 = vadd.f32 0.0, %v224
  %v226 = vpop.f32.mrf.mxu0
  %227 = vdwg.mxu0
  %v236 = vunpack.c.l.b16 %v57
  %v237 = vunpack.c.l.b16 %v58
  %v238 = vunpack.c.l.b16 %v59
  %v239 = vunpack.c.l.b16 %v60
  %v240 = vunpack.c.l.b16 %v61
  %v241 = vunpack.c.l.b16 %v62
  %v242 = vunpack.c.l.b16 %v63
  %v243 = vunpack.c.l.b16 %v64
  %v244 = vpack.c.b16 %v237, %v236
  %v245 = vpack.c.b16 %v239, %v238
  %v246 = vpack.c.b16 %v241, %v240
  %v247 = vpack.c.b16 %v243, %v242
  %v253 = vsel %vm106, %v49, 0
  %v256 = vsel %vm106, %v50, 0
  %v259 = vsel %vm106, %v51, 0
  %v262 = vsel %vm106, %v52, 0
  %v265 = vsel %vm106, %v53, 0
  %v268 = vsel %vm106, %v54, 0
  %v271 = vsel %vm106, %v55, 0
  %v274 = vsel %vm106, %v56, 0
  %276 = vmatprep.subr.bf16.mxu0 0
  %277 = vmatpush1.bf16.msra.mxu0 0
  %278 = vmatprep.subr.bf16.mxu0 0
  %279 = vmatpush1.bf16.msra.mxu0 0
  %280 = vmatprep.subr.bf16.mxu0 0
  %281 = vmatpush1.bf16.msra.mxu0 0
  %282 = vmatprep.subr.bf16.mxu0 0
  %283 = vmatpush1.bf16.msra.mxu0 0
  %284 = vmatprep.subr.bf16.mxu0 0
  %285 = vmatpush1.bf16.msra.mxu0 %v247
  %286 = vmatprep.subr.bf16.mxu0 0
  %287 = vmatpush1.bf16.msra.mxu0 %v246
  %288 = vmatprep.subr.bf16.mxu0 0
  %289 = vmatpush1.bf16.msra.mxu0 %v245
  %290 = vmatprep.subr.bf16.mxu0 0
  %291 = vmatpush1.bf16.msra.mxu0 %v244
  %292 = vmatprep.subr.bf16.mxu0 0
  %293 = vmatpush2.bf16.msra.mxu0 0
  %294 = vmatprep.subr.bf16.mxu0 0
  %295 = vmatpush2.bf16.msra.mxu0 0
  %296 = vmatprep.subr.bf16.mxu0 0
  %297 = vmatpush2.bf16.msra.mxu0 0
  %298 = vmatprep.subr.bf16.mxu0 0
  %299 = vmatpush2.bf16.msra.mxu0 0
  %300 = vmatprep.subr.bf16.mxu0 0
  %301 = vmatpush2.bf16.msra.mxu0 0
  %302 = vmatprep.subr.bf16.mxu0 0
  %303 = vmatpush2.bf16.msra.mxu0 0
  %304 = vmatprep.subr.bf16.mxu0 0
  %305 = vmatpush2.bf16.msra.mxu0 0
  %306 = vmatprep.subr.bf16.mxu0 0
  %307 = vmatpush2.bf16.msra.mxu0 0
  %308 = vmatprep.mubr.bf16.mxu0 0
  %309 = vmatmul.mubr.bf16.gmra.mxu0 %v253
  %v310 = vpop.f32.mrf.mxu0
  %v311 = vadd.f32 %v166, %v310
  %v312 = vpop.f32.mrf.mxu0
  %v313 = vpop.f32.mrf.mxu0
  %v314 = vadd.f32 %v169, %v313
  %v315 = vpop.f32.mrf.mxu0
  %316 = vmatprep.mubr.bf16.mxu0 0
  %317 = vmatmul.mubr.bf16.gmra.mxu0 %v256
  %v318 = vpop.f32.mrf.mxu0
  %v319 = vadd.f32 %v174, %v318
  %v320 = vpop.f32.mrf.mxu0
  %v321 = vpop.f32.mrf.mxu0
  %v322 = vadd.f32 %v177, %v321
  %v323 = vpop.f32.mrf.mxu0
  %324 = vmatprep.mubr.bf16.mxu0 0
  %325 = vmatmul.mubr.bf16.gmra.mxu0 %v259
  %v326 = vpop.f32.mrf.mxu0
  %v327 = vadd.f32 %v182, %v326
  %v328 = vpop.f32.mrf.mxu0
  %v329 = vpop.f32.mrf.mxu0
  %v330 = vadd.f32 %v185, %v329
  %v331 = vpop.f32.mrf.mxu0
  %332 = vmatprep.mubr.bf16.mxu0 0
  %333 = vmatmul.mubr.bf16.gmra.mxu0 %v262
  %v334 = vpop.f32.mrf.mxu0
  %v335 = vadd.f32 %v190, %v334
  %v336 = vpop.f32.mrf.mxu0
  %v337 = vpop.f32.mrf.mxu0
  %v338 = vadd.f32 %v193, %v337
  %v339 = vpop.f32.mrf.mxu0
  %340 = vmatprep.mubr.bf16.mxu0 0
  %341 = vmatmul.mubr.bf16.gmra.mxu0 %v265
  %v342 = vpop.f32.mrf.mxu0
  %v343 = vadd.f32 %v198, %v342
  %v344 = vpop.f32.mrf.mxu0
  %v345 = vpop.f32.mrf.mxu0
  %v346 = vadd.f32 %v201, %v345
  %v347 = vpop.f32.mrf.mxu0
  %348 = vmatprep.mubr.bf16.mxu0 0
  %349 = vmatmul.mubr.bf16.gmra.mxu0 %v268
  %v350 = vpop.f32.mrf.mxu0
  %v351 = vadd.f32 %v206, %v350
  %v352 = vpop.f32.mrf.mxu0
  %v353 = vpop.f32.mrf.mxu0
  %v354 = vadd.f32 %v209, %v353
  %v355 = vpop.f32.mrf.mxu0
  %356 = vmatprep.mubr.bf16.mxu0 0
  %357 = vmatmul.mubr.bf16.gmra.mxu0 %v271
  %v358 = vpop.f32.mrf.mxu0
  %v359 = vadd.f32 %v214, %v358
  %v360 = vpop.f32.mrf.mxu0
  %v361 = vpop.f32.mrf.mxu0
  %v362 = vadd.f32 %v217, %v361
  %v363 = vpop.f32.mrf.mxu0
  %364 = vmatprep.mubr.bf16.mxu0 0
  %365 = vmatmul.mubr.bf16.gmra.mxu0 %v274
  %v366 = vpop.f32.mrf.mxu0
  %v367 = vadd.f32 %v222, %v366
  %v368 = vpop.f32.mrf.mxu0
  %v369 = vpop.f32.mrf.mxu0
  %v370 = vadd.f32 %v225, %v369
  %v371 = vpop.f32.mrf.mxu0
  %372 = vdwg.mxu0
  %v373 = vpack.c.bf16 0.0, %v48
  %s374 = scalar_lea.vmem %s1, 64
  %v375 = vld [vmem:[%s374] sm:$0xf]
  %v376 = vld [vmem:[%s374 + $0x4] sm:$0xf]
  %v377 = vld [vmem:[%s374 + $0x8] sm:$0xf]
  %v378 = vld [vmem:[%s374 + $0xc] sm:$0xf]
  %v379 = vld [vmem:[%s374 + $0x10] sm:$0xf]
  %v380 = vld [vmem:[%s374 + $0x14] sm:$0xf]
  %v381 = vld [vmem:[%s374 + $0x18] sm:$0xf]
  %v382 = vld [vmem:[%s374 + $0x1c] sm:$0xf]
  %v391 = vunpack.c.l.b16 %v375
  %v392 = vunpack.c.l.b16 %v376
  %v393 = vunpack.c.l.b16 %v377
  %v394 = vunpack.c.l.b16 %v378
  %v395 = vunpack.c.l.b16 %v379
  %v396 = vunpack.c.l.b16 %v380
  %v397 = vunpack.c.l.b16 %v381
  %v398 = vunpack.c.l.b16 %v382
  %v399 = vpack.c.b16 %v392, %v391
  %v400 = vpack.c.b16 %v394, %v393
  %v401 = vpack.c.b16 %v396, %v395
  %v402 = vpack.c.b16 %v398, %v397
  %v408 = vsel %vm106, %v373, 0
  %410 = vmatprep.subr.bf16.mxu0 0
  %411 = vmatpush1.bf16.msra.mxu0 0
  %412 = vmatprep.subr.bf16.mxu0 0
  %413 = vmatpush1.bf16.msra.mxu0 0
  %414 = vmatprep.subr.bf16.mxu0 0
  %415 = vmatpush1.bf16.msra.mxu0 0
  %416 = vmatprep.subr.bf16.mxu0 0
  %417 = vmatpush1.bf16.msra.mxu0 0
  %418 = vmatprep.subr.bf16.mxu0 0
  %419 = vmatpush1.bf16.msra.mxu0 %v402
  %420 = vmatprep.subr.bf16.mxu0 0
  %421 = vmatpush1.bf16.msra.mxu0 %v401
  %422 = vmatprep.subr.bf16.mxu0 0
  %423 = vmatpush1.bf16.msra.mxu0 %v400
  %424 = vmatprep.subr.bf16.mxu0 0
  %425 = vmatpush1.bf16.msra.mxu0 %v399
  %426 = vmatprep.subr.bf16.mxu0 0
  %427 = vmatpush2.bf16.msra.mxu0 0
  %428 = vmatprep.subr.bf16.mxu0 0
  %429 = vmatpush2.bf16.msra.mxu0 0
  %430 = vmatprep.subr.bf16.mxu0 0
  %431 = vmatpush2.bf16.msra.mxu0 0
  %432 = vmatprep.subr.bf16.mxu0 0
  %433 = vmatpush2.bf16.msra.mxu0 0
  %434 = vmatprep.subr.bf16.mxu0 0
  %435 = vmatpush2.bf16.msra.mxu0 0
  %436 = vmatprep.subr.bf16.mxu0 0
  %437 = vmatpush2.bf16.msra.mxu0 0
  %438 = vmatprep.subr.bf16.mxu0 0
  %439 = vmatpush2.bf16.msra.mxu0 0
  %440 = vmatprep.subr.bf16.mxu0 0
  %441 = vmatpush2.bf16.msra.mxu0 0
  %442 = vmatprep.mubr.bf16.mxu0 0
  %443 = vmatmul.mubr.bf16.gmra.mxu0 %v256
  %v444 = vpop.f32.mrf.mxu0
  %v445 = vadd.f32 0.0, %v444
  %v446 = vpop.f32.mrf.mxu0
  %v447 = vpop.f32.mrf.mxu0
  %v448 = vadd.f32 0.0, %v447
  %v449 = vpop.f32.mrf.mxu0
  %450 = vmatprep.mubr.bf16.mxu0 0
  %451 = vmatmul.mubr.bf16.gmra.mxu0 %v259
  %v452 = vpop.f32.mrf.mxu0
  %v453 = vadd.f32 0.0, %v452
  %v454 = vpop.f32.mrf.mxu0
  %v455 = vpop.f32.mrf.mxu0
  %v456 = vadd.f32 0.0, %v455
  %v457 = vpop.f32.mrf.mxu0
  %458 = vmatprep.mubr.bf16.mxu0 0
  %459 = vmatmul.mubr.bf16.gmra.mxu0 %v262
  %v460 = vpop.f32.mrf.mxu0
  %v461 = vadd.f32 0.0, %v460
  %v462 = vpop.f32.mrf.mxu0
  %v463 = vpop.f32.mrf.mxu0
  %v464 = vadd.f32 0.0, %v463
  %v465 = vpop.f32.mrf.mxu0
  %466 = vmatprep.mubr.bf16.mxu0 0
  %467 = vmatmul.mubr.bf16.gmra.mxu0 %v265
  %v468 = vpop.f32.mrf.mxu0
  %v469 = vadd.f32 0.0, %v468
  %v470 = vpop.f32.mrf.mxu0
  %v471 = vpop.f32.mrf.mxu0
  %v472 = vadd.f32 0.0, %v471
  %v473 = vpop.f32.mrf.mxu0
  %474 = vmatprep.mubr.bf16.mxu0 0
  %475 = vmatmul.mubr.bf16.gmra.mxu0 %v268
  %v476 = vpop.f32.mrf.mxu0
  %v477 = vadd.f32 0.0, %v476
  %v478 = vpop.f32.mrf.mxu0
  %v479 = vpop.f32.mrf.mxu0
  %v480 = vadd.f32 0.0, %v479
  %v481 = vpop.f32.mrf.mxu0
  %482 = vmatprep.mubr.bf16.mxu0 0
  %483 = vmatmul.mubr.bf16.gmra.mxu0 %v271
  %v484 = vpop.f32.mrf.mxu0
  %v485 = vadd.f32 0.0, %v484
  %v486 = vpop.f32.mrf.mxu0
  %v487 = vpop.f32.mrf.mxu0
  %v488 = vadd.f32 0.0, %v487
  %v489 = vpop.f32.mrf.mxu0
  %490 = vmatprep.mubr.bf16.mxu0 0
  %491 = vmatmul.mubr.bf16.gmra.mxu0 %v274
  %v492 = vpop.f32.mrf.mxu0
  %v493 = vadd.f32 0.0, %v492
  %v494 = vpop.f32.mrf.mxu0
  %v495 = vpop.f32.mrf.mxu0
  %v496 = vadd.f32 0.0, %v495
  %v497 = vpop.f32.mrf.mxu0
  %498 = vmatprep.mubr.bf16.mxu0 0
  %499 = vmatmul.mubr.bf16.gmra.mxu0 %v408
  %v500 = vpop.f32.mrf.mxu0
  %v501 = vadd.f32 0.0, %v500
  %v502 = vpop.f32.mrf.mxu0
  %v503 = vpop.f32.mrf.mxu0
  %v504 = vadd.f32 0.0, %v503
  %v505 = vpop.f32.mrf.mxu0
  %506 = vdwg.mxu0
  %v507 = vadd.f32 %v311, %v445
  %v508 = vadd.f32 %v314, %v448
  %v509 = vadd.f32 %v319, %v453
  %v510 = vadd.f32 %v322, %v456
  %v511 = vadd.f32 %v327, %v461
  %v512 = vadd.f32 %v330, %v464
  %v513 = vadd.f32 %v335, %v469
  %v514 = vadd.f32 %v338, %v472
  %v515 = vadd.f32 %v343, %v477
  %v516 = vadd.f32 %v346, %v480
  %v517 = vadd.f32 %v351, %v485
  %v518 = vadd.f32 %v354, %v488
  %v519 = vadd.f32 %v359, %v493
  %v520 = vadd.f32 %v362, %v496
  %v521 = vadd.f32 %v367, %v501
  %v522 = vadd.f32 %v370, %v504
  %v523 = vld [vmem:[%s2] sm:$0x1]
  %v525 = vlaneseq
  %v526 = vshrl.u32 %v525, 7
  %v527 = vsub.s32 0, %v526
  %v528 = vrot.slane %v523, %v527
  %v530 = vadd.f32 %v507, %v528
  %v531 = vadd.f32 %v508, %v528
  %v532 = vadd.f32 %v509, %v528
  %v533 = vadd.f32 %v510, %v528
  %v534 = vadd.f32 %v511, %v528
  %v535 = vadd.f32 %v512, %v528
  %v536 = vadd.f32 %v513, %v528
  %v537 = vadd.f32 %v514, %v528
  %v538 = vadd.f32 %v515, %v528
  %v539 = vadd.f32 %v516, %v528
  %v540 = vadd.f32 %v517, %v528
  %v541 = vadd.f32 %v518, %v528
  %v542 = vadd.f32 %v519, %v528
  %v543 = vadd.f32 %v520, %v528
  %v544 = vadd.f32 %v521, %v528
  %v545 = vadd.f32 %v522, %v528
  %v546 = vmax.f32 %v530, 0.0
  %v547 = vmax.f32 %v531, 0.0
  %v548 = vmax.f32 %v532, 0.0
  %v549 = vmax.f32 %v533, 0.0
  %v550 = vmax.f32 %v534, 0.0
  %v551 = vmax.f32 %v535, 0.0
  %v552 = vmax.f32 %v536, 0.0
  %v553 = vmax.f32 %v537, 0.0
  %v554 = vmax.f32 %v538, 0.0
  %v555 = vmax.f32 %v539, 0.0
  %v556 = vmax.f32 %v540, 0.0
  %v557 = vmax.f32 %v541, 0.0
  %v558 = vmax.f32 %v542, 0.0
  %v559 = vmax.f32 %v543, 0.0
  %v560 = vmax.f32 %v544, 0.0
  %v561 = vmax.f32 %v545, 0.0
  %v562 = vpack.c.bf16 %v546, 0.0
  %v563 = vpack.c.bf16 %v548, %v547
  %v564 = vpack.c.bf16 %v550, %v549
  %v565 = vpack.c.bf16 %v552, %v551
  %v566 = vpack.c.bf16 %v554, %v553
  %v567 = vpack.c.bf16 %v556, %v555
  %v568 = vpack.c.bf16 %v558, %v557
  %v569 = vpack.c.bf16 %v560, %v559
  %v570 = vld [vmem:[%s3] sm:$0xf]
  %v571 = vld [vmem:[%s3 + $0x4] sm:$0xf]
  %v572 = vld [vmem:[%s3 + $0x8] sm:$0xf]
  %v573 = vld [vmem:[%s3 + $0xc] sm:$0xf]
  %v574 = vld [vmem:[%s3 + $0x10] sm:$0xf]
  %v575 = vld [vmem:[%s3 + $0x14] sm:$0xf]
  %v576 = vld [vmem:[%s3 + $0x18] sm:$0xf]
  %v577 = vld [vmem:[%s3 + $0x1c] sm:$0xf]
  %v578 = vld [vmem:[%s3 + $0x20] sm:$0xf]
  %v579 = vld [vmem:[%s3 + $0x24] sm:$0xf]
  %v580 = vld [vmem:[%s3 + $0x28] sm:$0xf]
  %v581 = vld [vmem:[%s3 + $0x2c] sm:$0xf]
  %v582 = vld [vmem:[%s3 + $0x30] sm:$0xf]
  %v583 = vld [vmem:[%s3 + $0x34] sm:$0xf]
  %v584 = vld [vmem:[%s3 + $0x38] sm:$0xf]
  %v585 = vld [vmem:[%s3 + $0x3c] sm:$0xf]
  %v586 = vpack.c.bf16 %v547, %v546
  %v587 = vpack.c.bf16 %v549, %v548
  %v588 = vpack.c.bf16 %v551, %v550
  %v589 = vpack.c.bf16 %v553, %v552
  %v590 = vpack.c.bf16 %v555, %v554
  %v591 = vpack.c.bf16 %v557, %v556
  %v592 = vpack.c.bf16 %v559, %v558
  %v593 = vpack.c.bf16 %v561, %v560
  %s594 = scalar_lea.vmem %s3, 64
  %v595 = vld [vmem:[%s594] sm:$0xf]
  %v596 = vld [vmem:[%s594 + $0x4] sm:$0xf]
  %v597 = vld [vmem:[%s594 + $0x8] sm:$0xf]
  %v598 = vld [vmem:[%s594 + $0xc] sm:$0xf]
  %v599 = vld [vmem:[%s594 + $0x10] sm:$0xf]
  %v600 = vld [vmem:[%s594 + $0x14] sm:$0xf]
  %v601 = vld [vmem:[%s594 + $0x18] sm:$0xf]
  %v602 = vld [vmem:[%s594 + $0x1c] sm:$0xf]
  %v603 = vld [vmem:[%s594 + $0x20] sm:$0xf]
  %v604 = vld [vmem:[%s594 + $0x24] sm:$0xf]
  %v605 = vld [vmem:[%s594 + $0x28] sm:$0xf]
  %v606 = vld [vmem:[%s594 + $0x2c] sm:$0xf]
  %v607 = vld [vmem:[%s594 + $0x30] sm:$0xf]
  %v608 = vld [vmem:[%s594 + $0x34] sm:$0xf]
  %v609 = vld [vmem:[%s594 + $0x38] sm:$0xf]
  %v610 = vld [vmem:[%s594 + $0x3c] sm:$0xf]
  %v627 = vunpack.c.l.b16 %v595
  %v628 = vunpack.c.l.b16 %v596
  %v629 = vunpack.c.l.b16 %v597
  %v630 = vunpack.c.l.b16 %v598
  %v631 = vunpack.c.l.b16 %v599
  %v632 = vunpack.c.l.b16 %v600
  %v633 = vunpack.c.l.b16 %v601
  %v634 = vunpack.c.l.b16 %v602
  %v635 = vunpack.c.l.b16 %v603
  %v636 = vunpack.c.l.b16 %v604
  %v637 = vunpack.c.l.b16 %v605
  %v638 = vunpack.c.l.b16 %v606
  %v639 = vunpack.c.l.b16 %v607
  %v640 = vunpack.c.l.b16 %v608
  %v641 = vunpack.c.l.b16 %v609
  %v642 = vunpack.c.l.b16 %v610
  %v643 = vpack.c.b16 %v628, %v627
  %v644 = vpack.c.b16 %v630, %v629
  %v645 = vpack.c.b16 %v632, %v631
  %v646 = vpack.c.b16 %v634, %v633
  %v647 = vpack.c.b16 %v636, %v635
  %v648 = vpack.c.b16 %v638, %v637
  %v649 = vpack.c.b16 %v640, %v639
  %v650 = vpack.c.b16 %v642, %v641
  %659 = vmatprep.subr.bf16.mxu0 0
  %660 = vmatpush1.bf16.msra.mxu0 %v650
  %661 = vmatprep.subr.bf16.mxu0 0
  %662 = vmatpush1.bf16.msra.mxu0 %v649
  %663 = vmatprep.subr.bf16.mxu0 0
  %664 = vmatpush1.bf16.msra.mxu0 %v648
  %665 = vmatprep.subr.bf16.mxu0 0
  %666 = vmatpush1.bf16.msra.mxu0 %v647
  %667 = vmatprep.subr.bf16.mxu0 0
  %668 = vmatpush1.bf16.msra.mxu0 %v646
  %669 = vmatprep.subr.bf16.mxu0 0
  %670 = vmatpush1.bf16.msra.mxu0 %v645
  %671 = vmatprep.subr.bf16.mxu0 0
  %672 = vmatpush1.bf16.msra.mxu0 %v644
  %673 = vmatprep.subr.bf16.mxu0 0
  %674 = vmatpush1.bf16.msra.mxu0 %v643
  %675 = vmatprep.subr.bf16.mxu0 0
  %676 = vmatpush2.bf16.msra.mxu0 0
  %677 = vmatprep.subr.bf16.mxu0 0
  %678 = vmatpush2.bf16.msra.mxu0 0
  %679 = vmatprep.subr.bf16.mxu0 0
  %680 = vmatpush2.bf16.msra.mxu0 0
  %681 = vmatprep.subr.bf16.mxu0 0
  %682 = vmatpush2.bf16.msra.mxu0 0
  %683 = vmatprep.subr.bf16.mxu0 0
  %684 = vmatpush2.bf16.msra.mxu0 0
  %685 = vmatprep.subr.bf16.mxu0 0
  %686 = vmatpush2.bf16.msra.mxu0 0
  %687 = vmatprep.subr.bf16.mxu0 0
  %688 = vmatpush2.bf16.msra.mxu0 0
  %689 = vmatprep.subr.bf16.mxu0 0
  %690 = vmatpush2.bf16.msra.mxu0 0
  %691 = vmatprep.mubr.bf16.mxu0 0
  %692 = vmatmul.mubr.bf16.gmra.mxu0 %v586
  %v693 = vpop.f32.mrf.mxu0
  %v694 = vadd.f32 0.0, %v693
  %v695 = vpop.f32.mrf.mxu0
  %v696 = vpop.f32.mrf.mxu0
  %v697 = vadd.f32 0.0, %v696
  %v698 = vpop.f32.mrf.mxu0
  %699 = vmatprep.mubr.bf16.mxu0 0
  %700 = vmatmul.mubr.bf16.gmra.mxu0 %v587
  %v701 = vpop.f32.mrf.mxu0
  %v702 = vadd.f32 0.0, %v701
  %v703 = vpop.f32.mrf.mxu0
  %v704 = vpop.f32.mrf.mxu0
  %v705 = vadd.f32 0.0, %v704
  %v706 = vpop.f32.mrf.mxu0
  %707 = vmatprep.mubr.bf16.mxu0 0
  %708 = vmatmul.mubr.bf16.gmra.mxu0 %v588
  %v709 = vpop.f32.mrf.mxu0
  %v710 = vadd.f32 0.0, %v709
  %v711 = vpop.f32.mrf.mxu0
  %v712 = vpop.f32.mrf.mxu0
  %v713 = vadd.f32 0.0, %v712
  %v714 = vpop.f32.mrf.mxu0
  %715 = vmatprep.mubr.bf16.mxu0 0
  %716 = vmatmul.mubr.bf16.gmra.mxu0 %v589
  %v717 = vpop.f32.mrf.mxu0
  %v718 = vadd.f32 0.0, %v717
  %v719 = vpop.f32.mrf.mxu0
  %v720 = vpop.f32.mrf.mxu0
  %v721 = vadd.f32 0.0, %v720
  %v722 = vpop.f32.mrf.mxu0
  %723 = vmatprep.mubr.bf16.mxu0 0
  %724 = vmatmul.mubr.bf16.gmra.mxu0 %v590
  %v725 = vpop.f32.mrf.mxu0
  %v726 = vadd.f32 0.0, %v725
  %v727 = vpop.f32.mrf.mxu0
  %v728 = vpop.f32.mrf.mxu0
  %v729 = vadd.f32 0.0, %v728
  %v730 = vpop.f32.mrf.mxu0
  %731 = vmatprep.mubr.bf16.mxu0 0
  %732 = vmatmul.mubr.bf16.gmra.mxu0 %v591
  %v733 = vpop.f32.mrf.mxu0
  %v734 = vadd.f32 0.0, %v733
  %v735 = vpop.f32.mrf.mxu0
  %v736 = vpop.f32.mrf.mxu0
  %v737 = vadd.f32 0.0, %v736
  %v738 = vpop.f32.mrf.mxu0
  %739 = vmatprep.mubr.bf16.mxu0 0
  %740 = vmatmul.mubr.bf16.gmra.mxu0 %v592
  %v741 = vpop.f32.mrf.mxu0
  %v742 = vadd.f32 0.0, %v741
  %v743 = vpop.f32.mrf.mxu0
  %v744 = vpop.f32.mrf.mxu0
  %v745 = vadd.f32 0.0, %v744
  %v746 = vpop.f32.mrf.mxu0
  %747 = vmatprep.mubr.bf16.mxu0 0
  %748 = vmatmul.mubr.bf16.gmra.mxu0 %v593
  %v749 = vpop.f32.mrf.mxu0
  %v750 = vadd.f32 0.0, %v749
  %v751 = vpop.f32.mrf.mxu0
  %v752 = vpop.f32.mrf.mxu0
  %v753 = vadd.f32 0.0, %v752
  %v754 = vpop.f32.mrf.mxu0
  %755 = vdwg.mxu0
  %v772 = vunpack.c.l.b16 %v570
  %v773 = vunpack.c.l.b16 %v571
  %v774 = vunpack.c.l.b16 %v572
  %v775 = vunpack.c.l.b16 %v573
  %v776 = vunpack.c.l.b16 %v574
  %v777 = vunpack.c.l.b16 %v575
  %v778 = vunpack.c.l.b16 %v576
  %v779 = vunpack.c.l.b16 %v577
  %v780 = vunpack.c.l.b16 %v578
  %v781 = vunpack.c.l.b16 %v579
  %v782 = vunpack.c.l.b16 %v580
  %v783 = vunpack.c.l.b16 %v581
  %v784 = vunpack.c.l.b16 %v582
  %v785 = vunpack.c.l.b16 %v583
  %v786 = vunpack.c.l.b16 %v584
  %v787 = vunpack.c.l.b16 %v585
  %v788 = vpack.c.b16 %v773, %v772
  %v789 = vpack.c.b16 %v775, %v774
  %v790 = vpack.c.b16 %v777, %v776
  %v791 = vpack.c.b16 %v779, %v778
  %v792 = vpack.c.b16 %v781, %v780
  %v793 = vpack.c.b16 %v783, %v782
  %v794 = vpack.c.b16 %v785, %v784
  %v795 = vpack.c.b16 %v787, %v786
  %804 = vmatprep.subr.bf16.mxu0 0
  %805 = vmatpush1.bf16.msra.mxu0 %v795
  %806 = vmatprep.subr.bf16.mxu0 0
  %807 = vmatpush1.bf16.msra.mxu0 %v794
  %808 = vmatprep.subr.bf16.mxu0 0
  %809 = vmatpush1.bf16.msra.mxu0 %v793
  %810 = vmatprep.subr.bf16.mxu0 0
  %811 = vmatpush1.bf16.msra.mxu0 %v792
  %812 = vmatprep.subr.bf16.mxu0 0
  %813 = vmatpush1.bf16.msra.mxu0 %v791
  %814 = vmatprep.subr.bf16.mxu0 0
  %815 = vmatpush1.bf16.msra.mxu0 %v790
  %816 = vmatprep.subr.bf16.mxu0 0
  %817 = vmatpush1.bf16.msra.mxu0 %v789
  %818 = vmatprep.subr.bf16.mxu0 0
  %819 = vmatpush1.bf16.msra.mxu0 %v788
  %820 = vmatprep.subr.bf16.mxu0 0
  %821 = vmatpush2.bf16.msra.mxu0 0
  %822 = vmatprep.subr.bf16.mxu0 0
  %823 = vmatpush2.bf16.msra.mxu0 0
  %824 = vmatprep.subr.bf16.mxu0 0
  %825 = vmatpush2.bf16.msra.mxu0 0
  %826 = vmatprep.subr.bf16.mxu0 0
  %827 = vmatpush2.bf16.msra.mxu0 0
  %828 = vmatprep.subr.bf16.mxu0 0
  %829 = vmatpush2.bf16.msra.mxu0 0
  %830 = vmatprep.subr.bf16.mxu0 0
  %831 = vmatpush2.bf16.msra.mxu0 0
  %832 = vmatprep.subr.bf16.mxu0 0
  %833 = vmatpush2.bf16.msra.mxu0 0
  %834 = vmatprep.subr.bf16.mxu0 0
  %835 = vmatpush2.bf16.msra.mxu0 0
  %836 = vmatprep.mubr.bf16.mxu0 0
  %837 = vmatmul.mubr.bf16.gmra.mxu0 %v562
  %v838 = vpop.f32.mrf.mxu0
  %v839 = vadd.f32 %v694, %v838
  %v840 = vpop.f32.mrf.mxu0
  %v841 = vpop.f32.mrf.mxu0
  %v842 = vadd.f32 %v697, %v841
  %v843 = vpop.f32.mrf.mxu0
  %844 = vmatprep.mubr.bf16.mxu0 0
  %845 = vmatmul.mubr.bf16.gmra.mxu0 %v563
  %v846 = vpop.f32.mrf.mxu0
  %v847 = vadd.f32 %v702, %v846
  %v848 = vpop.f32.mrf.mxu0
  %v849 = vpop.f32.mrf.mxu0
  %v850 = vadd.f32 %v705, %v849
  %v851 = vpop.f32.mrf.mxu0
  %852 = vmatprep.mubr.bf16.mxu0 0
  %853 = vmatmul.mubr.bf16.gmra.mxu0 %v564
  %v854 = vpop.f32.mrf.mxu0
  %v855 = vadd.f32 %v710, %v854
  %v856 = vpop.f32.mrf.mxu0
  %v857 = vpop.f32.mrf.mxu0
  %v858 = vadd.f32 %v713, %v857
  %v859 = vpop.f32.mrf.mxu0
  %860 = vmatprep.mubr.bf16.mxu0 0
  %861 = vmatmul.mubr.bf16.gmra.mxu0 %v565
  %v862 = vpop.f32.mrf.mxu0
  %v863 = vadd.f32 %v718, %v862
  %v864 = vpop.f32.mrf.mxu0
  %v865 = vpop.f32.mrf.mxu0
  %v866 = vadd.f32 %v721, %v865
  %v867 = vpop.f32.mrf.mxu0
  %868 = vmatprep.mubr.bf16.mxu0 0
  %869 = vmatmul.mubr.bf16.gmra.mxu0 %v566
  %v870 = vpop.f32.mrf.mxu0
  %v871 = vadd.f32 %v726, %v870
  %v872 = vpop.f32.mrf.mxu0
  %v873 = vpop.f32.mrf.mxu0
  %v874 = vadd.f32 %v729, %v873
  %v875 = vpop.f32.mrf.mxu0
  %876 = vmatprep.mubr.bf16.mxu0 0
  %877 = vmatmul.mubr.bf16.gmra.mxu0 %v567
  %v878 = vpop.f32.mrf.mxu0
  %v879 = vadd.f32 %v734, %v878
  %v880 = vpop.f32.mrf.mxu0
  %v881 = vpop.f32.mrf.mxu0
  %v882 = vadd.f32 %v737, %v881
  %v883 = vpop.f32.mrf.mxu0
  %884 = vmatprep.mubr.bf16.mxu0 0
  %885 = vmatmul.mubr.bf16.gmra.mxu0 %v568
  %v886 = vpop.f32.mrf.mxu0
  %v887 = vadd.f32 %v742, %v886
  %v888 = vpop.f32.mrf.mxu0
  %v889 = vpop.f32.mrf.mxu0
  %v890 = vadd.f32 %v745, %v889
  %v891 = vpop.f32.mrf.mxu0
  %892 = vmatprep.mubr.bf16.mxu0 0
  %893 = vmatmul.mubr.bf16.gmra.mxu0 %v569
  %v894 = vpop.f32.mrf.mxu0
  %v895 = vadd.f32 %v750, %v894
  %v896 = vpop.f32.mrf.mxu0
  %v897 = vpop.f32.mrf.mxu0
  %v898 = vadd.f32 %v753, %v897
  %v899 = vpop.f32.mrf.mxu0
  %900 = vdwg.mxu0
  %v901 = vpack.c.bf16 0.0, %v561
  %s902 = scalar_lea.vmem %s3, 128
  %v903 = vld [vmem:[%s902] sm:$0xf]
  %v904 = vld [vmem:[%s902 + $0x4] sm:$0xf]
  %v905 = vld [vmem:[%s902 + $0x8] sm:$0xf]
  %v906 = vld [vmem:[%s902 + $0xc] sm:$0xf]
  %v907 = vld [vmem:[%s902 + $0x10] sm:$0xf]
  %v908 = vld [vmem:[%s902 + $0x14] sm:$0xf]
  %v909 = vld [vmem:[%s902 + $0x18] sm:$0xf]
  %v910 = vld [vmem:[%s902 + $0x1c] sm:$0xf]
  %v911 = vld [vmem:[%s902 + $0x20] sm:$0xf]
  %v912 = vld [vmem:[%s902 + $0x24] sm:$0xf]
  %v913 = vld [vmem:[%s902 + $0x28] sm:$0xf]
  %v914 = vld [vmem:[%s902 + $0x2c] sm:$0xf]
  %v915 = vld [vmem:[%s902 + $0x30] sm:$0xf]
  %v916 = vld [vmem:[%s902 + $0x34] sm:$0xf]
  %v917 = vld [vmem:[%s902 + $0x38] sm:$0xf]
  %v918 = vld [vmem:[%s902 + $0x3c] sm:$0xf]
  %v935 = vunpack.c.l.b16 %v903
  %v936 = vunpack.c.l.b16 %v904
  %v937 = vunpack.c.l.b16 %v905
  %v938 = vunpack.c.l.b16 %v906
  %v939 = vunpack.c.l.b16 %v907
  %v940 = vunpack.c.l.b16 %v908
  %v941 = vunpack.c.l.b16 %v909
  %v942 = vunpack.c.l.b16 %v910
  %v943 = vunpack.c.l.b16 %v911
  %v944 = vunpack.c.l.b16 %v912
  %v945 = vunpack.c.l.b16 %v913
  %v946 = vunpack.c.l.b16 %v914
  %v947 = vunpack.c.l.b16 %v915
  %v948 = vunpack.c.l.b16 %v916
  %v949 = vunpack.c.l.b16 %v917
  %v950 = vunpack.c.l.b16 %v918
  %v951 = vpack.c.b16 %v936, %v935
  %v952 = vpack.c.b16 %v938, %v937
  %v953 = vpack.c.b16 %v940, %v939
  %v954 = vpack.c.b16 %v942, %v941
  %v955 = vpack.c.b16 %v944, %v943
  %v956 = vpack.c.b16 %v946, %v945
  %v957 = vpack.c.b16 %v948, %v947
  %v958 = vpack.c.b16 %v950, %v949
  %967 = vmatprep.subr.bf16.mxu0 0
  %968 = vmatpush1.bf16.msra.mxu0 %v958
  %969 = vmatprep.subr.bf16.mxu0 0
  %970 = vmatpush1.bf16.msra.mxu0 %v957
  %971 = vmatprep.subr.bf16.mxu0 0
  %972 = vmatpush1.bf16.msra.mxu0 %v956
  %973 = vmatprep.subr.bf16.mxu0 0
  %974 = vmatpush1.bf16.msra.mxu0 %v955
  %975 = vmatprep.subr.bf16.mxu0 0
  %976 = vmatpush1.bf16.msra.mxu0 %v954
  %977 = vmatprep.subr.bf16.mxu0 0
  %978 = vmatpush1.bf16.msra.mxu0 %v953
  %979 = vmatprep.subr.bf16.mxu0 0
  %980 = vmatpush1.bf16.msra.mxu0 %v952
  %981 = vmatprep.subr.bf16.mxu0 0
  %982 = vmatpush1.bf16.msra.mxu0 %v951
  %983 = vmatprep.subr.bf16.mxu0 0
  %984 = vmatpush2.bf16.msra.mxu0 0
  %985 = vmatprep.subr.bf16.mxu0 0
  %986 = vmatpush2.bf16.msra.mxu0 0
  %987 = vmatprep.subr.bf16.mxu0 0
  %988 = vmatpush2.bf16.msra.mxu0 0
  %989 = vmatprep.subr.bf16.mxu0 0
  %990 = vmatpush2.bf16.msra.mxu0 0
  %991 = vmatprep.subr.bf16.mxu0 0
  %992 = vmatpush2.bf16.msra.mxu0 0
  %993 = vmatprep.subr.bf16.mxu0 0
  %994 = vmatpush2.bf16.msra.mxu0 0
  %995 = vmatprep.subr.bf16.mxu0 0
  %996 = vmatpush2.bf16.msra.mxu0 0
  %997 = vmatprep.subr.bf16.mxu0 0
  %998 = vmatpush2.bf16.msra.mxu0 0
  %999 = vmatprep.mubr.bf16.mxu0 0
  %1000 = vmatmul.mubr.bf16.gmra.mxu0 %v563
  %v1001 = vpop.f32.mrf.mxu0
  %v1002 = vadd.f32 0.0, %v1001
  %v1003 = vpop.f32.mrf.mxu0
  %v1004 = vpop.f32.mrf.mxu0
  %v1005 = vadd.f32 0.0, %v1004
  %v1006 = vpop.f32.mrf.mxu0
  %1007 = vmatprep.mubr.bf16.mxu0 0
  %1008 = vmatmul.mubr.bf16.gmra.mxu0 %v564
  %v1009 = vpop.f32.mrf.mxu0
  %v1010 = vadd.f32 0.0, %v1009
  %v1011 = vpop.f32.mrf.mxu0
  %v1012 = vpop.f32.mrf.mxu0
  %v1013 = vadd.f32 0.0, %v1012
  %v1014 = vpop.f32.mrf.mxu0
  %1015 = vmatprep.mubr.bf16.mxu0 0
  %1016 = vmatmul.mubr.bf16.gmra.mxu0 %v565
  %v1017 = vpop.f32.mrf.mxu0
  %v1018 = vadd.f32 0.0, %v1017
  %v1019 = vpop.f32.mrf.mxu0
  %v1020 = vpop.f32.mrf.mxu0
  %v1021 = vadd.f32 0.0, %v1020
  %v1022 = vpop.f32.mrf.mxu0
  %1023 = vmatprep.mubr.bf16.mxu0 0
  %1024 = vmatmul.mubr.bf16.gmra.mxu0 %v566
  %v1025 = vpop.f32.mrf.mxu0
  %v1026 = vadd.f32 0.0, %v1025
  %v1027 = vpop.f32.mrf.mxu0
  %v1028 = vpop.f32.mrf.mxu0
  %v1029 = vadd.f32 0.0, %v1028
  %v1030 = vpop.f32.mrf.mxu0
  %1031 = vmatprep.mubr.bf16.mxu0 0
  %1032 = vmatmul.mubr.bf16.gmra.mxu0 %v567
  %v1033 = vpop.f32.mrf.mxu0
  %v1034 = vadd.f32 0.0, %v1033
  %v1035 = vpop.f32.mrf.mxu0
  %v1036 = vpop.f32.mrf.mxu0
  %v1037 = vadd.f32 0.0, %v1036
  %v1038 = vpop.f32.mrf.mxu0
  %1039 = vmatprep.mubr.bf16.mxu0 0
  %1040 = vmatmul.mubr.bf16.gmra.mxu0 %v568
  %v1041 = vpop.f32.mrf.mxu0
  %v1042 = vadd.f32 0.0, %v1041
  %v1043 = vpop.f32.mrf.mxu0
  %v1044 = vpop.f32.mrf.mxu0
  %v1045 = vadd.f32 0.0, %v1044
  %v1046 = vpop.f32.mrf.mxu0
  %1047 = vmatprep.mubr.bf16.mxu0 0
  %1048 = vmatmul.mubr.bf16.gmra.mxu0 %v569
  %v1049 = vpop.f32.mrf.mxu0
  %v1050 = vadd.f32 0.0, %v1049
  %v1051 = vpop.f32.mrf.mxu0
  %v1052 = vpop.f32.mrf.mxu0
  %v1053 = vadd.f32 0.0, %v1052
  %v1054 = vpop.f32.mrf.mxu0
  %1055 = vmatprep.mubr.bf16.mxu0 0
  %1056 = vmatmul.mubr.bf16.gmra.mxu0 %v901
  %v1057 = vpop.f32.mrf.mxu0
  %v1058 = vadd.f32 0.0, %v1057
  %v1059 = vpop.f32.mrf.mxu0
  %v1060 = vpop.f32.mrf.mxu0
  %v1061 = vadd.f32 0.0, %v1060
  %v1062 = vpop.f32.mrf.mxu0
  %1063 = vdwg.mxu0
  %v1064 = vadd.f32 %v839, %v1002
  %v1065 = vadd.f32 %v842, %v1005
  %v1066 = vadd.f32 %v847, %v1010
  %v1067 = vadd.f32 %v850, %v1013
  %v1068 = vadd.f32 %v855, %v1018
  %v1069 = vadd.f32 %v858, %v1021
  %v1070 = vadd.f32 %v863, %v1026
  %v1071 = vadd.f32 %v866, %v1029
  %v1072 = vadd.f32 %v871, %v1034
  %v1073 = vadd.f32 %v874, %v1037
  %v1074 = vadd.f32 %v879, %v1042
  %v1075 = vadd.f32 %v882, %v1045
  %v1076 = vadd.f32 %v887, %v1050
  %v1077 = vadd.f32 %v890, %v1053
  %v1078 = vadd.f32 %v895, %v1058
  %v1079 = vadd.f32 %v898, %v1061
  %v1080 = vld [vmem:[%s4] sm:$0x1]
  %v1082 = vlaneseq
  %v1083 = vshrl.u32 %v1082, 7
  %v1084 = vsub.s32 0, %v1083
  %v1085 = vrot.slane %v1080, %v1084
  %v1087 = vadd.f32 %v1064, %v1085
  %v1088 = vadd.f32 %v1065, %v1085
  %v1089 = vadd.f32 %v1066, %v1085
  %v1090 = vadd.f32 %v1067, %v1085
  %v1091 = vadd.f32 %v1068, %v1085
  %v1092 = vadd.f32 %v1069, %v1085
  %v1093 = vadd.f32 %v1070, %v1085
  %v1094 = vadd.f32 %v1071, %v1085
  %v1095 = vadd.f32 %v1072, %v1085
  %v1096 = vadd.f32 %v1073, %v1085
  %v1097 = vadd.f32 %v1074, %v1085
  %v1098 = vadd.f32 %v1075, %v1085
  %v1099 = vadd.f32 %v1076, %v1085
  %v1100 = vadd.f32 %v1077, %v1085
  %v1101 = vadd.f32 %v1078, %v1085
  %v1102 = vadd.f32 %v1079, %v1085
  %v1103 = vmax.f32 %v1087, 0.0
  %v1104 = vmax.f32 %v1088, 0.0
  %v1105 = vmax.f32 %v1089, 0.0
  %v1106 = vmax.f32 %v1090, 0.0
  %v1107 = vmax.f32 %v1091, 0.0
  %v1108 = vmax.f32 %v1092, 0.0
  %v1109 = vmax.f32 %v1093, 0.0
  %v1110 = vmax.f32 %v1094, 0.0
  %v1111 = vmax.f32 %v1095, 0.0
  %v1112 = vmax.f32 %v1096, 0.0
  %v1113 = vmax.f32 %v1097, 0.0
  %v1114 = vmax.f32 %v1098, 0.0
  %v1115 = vmax.f32 %v1099, 0.0
  %v1116 = vmax.f32 %v1100, 0.0
  %v1117 = vmax.f32 %v1101, 0.0
  %v1118 = vmax.f32 %v1102, 0.0
  %v1119 = vpack.c.bf16 %v1103, %v1103
  %v1120 = vpack.c.bf16 %v1104, %v1104
  %v1121 = vpack.c.bf16 %v1105, %v1105
  %v1122 = vpack.c.bf16 %v1106, %v1106
  %v1123 = vpack.c.bf16 %v1107, %v1107
  %v1124 = vpack.c.bf16 %v1108, %v1108
  %v1125 = vpack.c.bf16 %v1109, %v1109
  %v1126 = vpack.c.bf16 %v1110, %v1110
  %v1127 = vpack.c.bf16 %v1111, %v1111
  %v1128 = vpack.c.bf16 %v1112, %v1112
  %v1129 = vpack.c.bf16 %v1113, %v1113
  %v1130 = vpack.c.bf16 %v1114, %v1114
  %v1131 = vpack.c.bf16 %v1115, %v1115
  %v1132 = vpack.c.bf16 %v1116, %v1116
  %v1133 = vpack.c.bf16 %v1117, %v1117
  %v1134 = vpack.c.bf16 %v1118, %v1118
  %v1135 = vld [vmem:[%s5] sm:$0xf]
  %v1136 = vld [vmem:[%s5 + $0x4] sm:$0xf]
  %v1137 = vld [vmem:[%s5 + $0x8] sm:$0xf]
  %v1138 = vld [vmem:[%s5 + $0xc] sm:$0xf]
  %v1139 = vld [vmem:[%s5 + $0x10] sm:$0xf]
  %v1140 = vld [vmem:[%s5 + $0x14] sm:$0xf]
  %v1141 = vld [vmem:[%s5 + $0x18] sm:$0xf]
  %v1142 = vld [vmem:[%s5 + $0x1c] sm:$0xf]
  %v1143 = vld [vmem:[%s5 + $0x20] sm:$0xf]
  %v1144 = vld [vmem:[%s5 + $0x24] sm:$0xf]
  %v1145 = vld [vmem:[%s5 + $0x28] sm:$0xf]
  %v1146 = vld [vmem:[%s5 + $0x2c] sm:$0xf]
  %v1147 = vld [vmem:[%s5 + $0x30] sm:$0xf]
  %v1148 = vld [vmem:[%s5 + $0x34] sm:$0xf]
  %v1149 = vld [vmem:[%s5 + $0x38] sm:$0xf]
  %v1150 = vld [vmem:[%s5 + $0x3c] sm:$0xf]
  %v1151 = vld [vmem:[%s5 + $0x40] sm:$0xf]
  %v1152 = vld [vmem:[%s5 + $0x44] sm:$0xf]
  %v1153 = vld [vmem:[%s5 + $0x48] sm:$0xf]
  %v1154 = vld [vmem:[%s5 + $0x4c] sm:$0xf]
  %v1155 = vld [vmem:[%s5 + $0x50] sm:$0xf]
  %v1156 = vld [vmem:[%s5 + $0x54] sm:$0xf]
  %v1157 = vld [vmem:[%s5 + $0x58] sm:$0xf]
  %v1158 = vld [vmem:[%s5 + $0x5c] sm:$0xf]
  %v1159 = vld [vmem:[%s5 + $0x60] sm:$0xf]
  %v1160 = vld [vmem:[%s5 + $0x64] sm:$0xf]
  %v1161 = vld [vmem:[%s5 + $0x68] sm:$0xf]
  %v1162 = vld [vmem:[%s5 + $0x6c] sm:$0xf]
  %v1163 = vld [vmem:[%s5 + $0x70] sm:$0xf]
  %v1164 = vld [vmem:[%s5 + $0x74] sm:$0xf]
  %v1165 = vld [vmem:[%s5 + $0x78] sm:$0xf]
  %v1166 = vld [vmem:[%s5 + $0x7c] sm:$0xf]
  %v1167 = vld [vmem:[%s5 + $0x80] sm:$0xf]
  %v1168 = vld [vmem:[%s5 + $0x84] sm:$0xf]
  %v1169 = vld [vmem:[%s5 + $0x88] sm:$0xf]
  %v1170 = vld [vmem:[%s5 + $0x8c] sm:$0xf]
  %v1171 = vld [vmem:[%s5 + $0x90] sm:$0xf]
  %v1172 = vld [vmem:[%s5 + $0x94] sm:$0xf]
  %v1173 = vld [vmem:[%s5 + $0x98] sm:$0xf]
  %v1174 = vld [vmem:[%s5 + $0x9c] sm:$0xf]
  %v1175 = vld [vmem:[%s5 + $0xa0] sm:$0xf]
  %v1176 = vld [vmem:[%s5 + $0xa4] sm:$0xf]
  %v1177 = vld [vmem:[%s5 + $0xa8] sm:$0xf]
  %v1178 = vld [vmem:[%s5 + $0xac] sm:$0xf]
  %v1179 = vld [vmem:[%s5 + $0xb0] sm:$0xf]
  %v1180 = vld [vmem:[%s5 + $0xb4] sm:$0xf]
  %v1181 = vld [vmem:[%s5 + $0xb8] sm:$0xf]
  %v1182 = vld [vmem:[%s5 + $0xbc] sm:$0xf]
  %v1183 = vld [vmem:[%s5 + $0xc0] sm:$0xf]
  %v1184 = vld [vmem:[%s5 + $0xc4] sm:$0xf]
  %v1185 = vld [vmem:[%s5 + $0xc8] sm:$0xf]
  %v1186 = vld [vmem:[%s5 + $0xcc] sm:$0xf]
  %v1187 = vld [vmem:[%s5 + $0xd0] sm:$0xf]
  %v1188 = vld [vmem:[%s5 + $0xd4] sm:$0xf]
  %v1189 = vld [vmem:[%s5 + $0xd8] sm:$0xf]
  %v1190 = vld [vmem:[%s5 + $0xdc] sm:$0xf]
  %v1191 = vld [vmem:[%s5 + $0xe0] sm:$0xf]
  %v1192 = vld [vmem:[%s5 + $0xe4] sm:$0xf]
  %v1193 = vld [vmem:[%s5 + $0xe8] sm:$0xf]
  %v1194 = vld [vmem:[%s5 + $0xec] sm:$0xf]
  %v1195 = vld [vmem:[%s5 + $0xf0] sm:$0xf]
  %v1196 = vld [vmem:[%s5 + $0xf4] sm:$0xf]
  %v1197 = vld [vmem:[%s5 + $0xf8] sm:$0xf]
  %v1198 = vld [vmem:[%s5 + $0xfc] sm:$0xf]
  %v1199 = vld [vmem:[%s5 + $0x100] sm:$0xf]
  %v1200 = vld [vmem:[%s5 + $0x104] sm:$0xf]
  %v1201 = vld [vmem:[%s5 + $0x108] sm:$0xf]
  %v1202 = vld [vmem:[%s5 + $0x10c] sm:$0xf]
  %v1203 = vld [vmem:[%s5 + $0x110] sm:$0xf]
  %v1204 = vld [vmem:[%s5 + $0x114] sm:$0xf]
  %v1205 = vld [vmem:[%s5 + $0x118] sm:$0xf]
  %v1206 = vld [vmem:[%s5 + $0x11c] sm:$0xf]
  %v1207 = vld [vmem:[%s5 + $0x120] sm:$0xf]
  %v1208 = vld [vmem:[%s5 + $0x124] sm:$0xf]
  %v1209 = vld [vmem:[%s5 + $0x128] sm:$0xf]
  %v1210 = vld [vmem:[%s5 + $0x12c] sm:$0xf]
  %v1211 = vld [vmem:[%s5 + $0x130] sm:$0xf]
  %v1212 = vld [vmem:[%s5 + $0x134] sm:$0xf]
  %v1213 = vld [vmem:[%s5 + $0x138] sm:$0xf]
  %v1214 = vld [vmem:[%s5 + $0x13c] sm:$0xf]
  %v1215 = vld [vmem:[%s5 + $0x140] sm:$0xf]
  %v1216 = vld [vmem:[%s5 + $0x144] sm:$0xf]
  %v1217 = vld [vmem:[%s5 + $0x148] sm:$0xf]
  %v1218 = vld [vmem:[%s5 + $0x14c] sm:$0xf]
  %v1219 = vld [vmem:[%s5 + $0x150] sm:$0xf]
  %v1220 = vld [vmem:[%s5 + $0x154] sm:$0xf]
  %v1221 = vld [vmem:[%s5 + $0x158] sm:$0xf]
  %v1222 = vld [vmem:[%s5 + $0x15c] sm:$0xf]
  %v1223 = vld [vmem:[%s5 + $0x160] sm:$0xf]
  %v1224 = vld [vmem:[%s5 + $0x164] sm:$0xf]
  %v1225 = vld [vmem:[%s5 + $0x168] sm:$0xf]
  %v1226 = vld [vmem:[%s5 + $0x16c] sm:$0xf]
  %v1227 = vld [vmem:[%s5 + $0x170] sm:$0xf]
  %v1228 = vld [vmem:[%s5 + $0x174] sm:$0xf]
  %v1229 = vld [vmem:[%s5 + $0x178] sm:$0xf]
  %v1230 = vld [vmem:[%s5 + $0x17c] sm:$0xf]
  %v1231 = vld [vmem:[%s5 + $0x180] sm:$0xf]
  %v1232 = vld [vmem:[%s5 + $0x184] sm:$0xf]
  %v1233 = vld [vmem:[%s5 + $0x188] sm:$0xf]
  %v1234 = vld [vmem:[%s5 + $0x18c] sm:$0xf]
  %v1235 = vld [vmem:[%s5 + $0x190] sm:$0xf]
  %v1236 = vld [vmem:[%s5 + $0x194] sm:$0xf]
  %v1237 = vld [vmem:[%s5 + $0x198] sm:$0xf]
  %v1238 = vld [vmem:[%s5 + $0x19c] sm:$0xf]
  %v1239 = vld [vmem:[%s5 + $0x1a0] sm:$0xf]
  %v1240 = vld [vmem:[%s5 + $0x1a4] sm:$0xf]
  %v1241 = vld [vmem:[%s5 + $0x1a8] sm:$0xf]
  %v1242 = vld [vmem:[%s5 + $0x1ac] sm:$0xf]
  %v1243 = vld [vmem:[%s5 + $0x1b0] sm:$0xf]
  %v1244 = vld [vmem:[%s5 + $0x1b4] sm:$0xf]
  %v1245 = vld [vmem:[%s5 + $0x1b8] sm:$0xf]
  %v1246 = vld [vmem:[%s5 + $0x1bc] sm:$0xf]
  %v1247 = vld [vmem:[%s5 + $0x1c0] sm:$0xf]
  %v1248 = vld [vmem:[%s5 + $0x1c4] sm:$0xf]
  %v1249 = vld [vmem:[%s5 + $0x1c8] sm:$0xf]
  %v1250 = vld [vmem:[%s5 + $0x1cc] sm:$0xf]
  %v1251 = vld [vmem:[%s5 + $0x1d0] sm:$0xf]
  %v1252 = vld [vmem:[%s5 + $0x1d4] sm:$0xf]
  %v1253 = vld [vmem:[%s5 + $0x1d8] sm:$0xf]
  %v1254 = vld [vmem:[%s5 + $0x1dc] sm:$0xf]
  %v1255 = vld [vmem:[%s5 + $0x1e0] sm:$0xf]
  %v1256 = vld [vmem:[%s5 + $0x1e4] sm:$0xf]
  %v1257 = vld [vmem:[%s5 + $0x1e8] sm:$0xf]
  %v1258 = vld [vmem:[%s5 + $0x1ec] sm:$0xf]
  %v1259 = vld [vmem:[%s5 + $0x1f0] sm:$0xf]
  %v1260 = vld [vmem:[%s5 + $0x1f4] sm:$0xf]
  %v1261 = vld [vmem:[%s5 + $0x1f8] sm:$0xf]
  %v1262 = vld [vmem:[%s5 + $0x1fc] sm:$0xf]
  %v1263 = vld [vmem:[%s5 + $0x200] sm:$0xf]
  %v1264 = vld [vmem:[%s5 + $0x204] sm:$0xf]
  %v1265 = vld [vmem:[%s5 + $0x208] sm:$0xf]
  %v1266 = vld [vmem:[%s5 + $0x20c] sm:$0xf]
  %v1267 = vld [vmem:[%s5 + $0x210] sm:$0xf]
  %v1268 = vld [vmem:[%s5 + $0x214] sm:$0xf]
  %v1269 = vld [vmem:[%s5 + $0x218] sm:$0xf]
  %v1270 = vld [vmem:[%s5 + $0x21c] sm:$0xf]
  %v1271 = vld [vmem:[%s5 + $0x220] sm:$0xf]
  %v1272 = vld [vmem:[%s5 + $0x224] sm:$0xf]
  %v1273 = vld [vmem:[%s5 + $0x228] sm:$0xf]
  %v1274 = vld [vmem:[%s5 + $0x22c] sm:$0xf]
  %v1275 = vld [vmem:[%s5 + $0x230] sm:$0xf]
  %v1276 = vld [vmem:[%s5 + $0x234] sm:$0xf]
  %v1277 = vld [vmem:[%s5 + $0x238] sm:$0xf]
  %v1278 = vld [vmem:[%s5 + $0x23c] sm:$0xf]
  %v1279 = vld [vmem:[%s5 + $0x240] sm:$0xf]
  %v1280 = vld [vmem:[%s5 + $0x244] sm:$0xf]
  %v1281 = vld [vmem:[%s5 + $0x248] sm:$0xf]
  %v1282 = vld [vmem:[%s5 + $0x24c] sm:$0xf]
  %v1283 = vld [vmem:[%s5 + $0x250] sm:$0xf]
  %v1284 = vld [vmem:[%s5 + $0x254] sm:$0xf]
  %v1285 = vld [vmem:[%s5 + $0x258] sm:$0xf]
  %v1286 = vld [vmem:[%s5 + $0x25c] sm:$0xf]
  %v1287 = vld [vmem:[%s5 + $0x260] sm:$0xf]
  %v1288 = vld [vmem:[%s5 + $0x264] sm:$0xf]
  %v1289 = vld [vmem:[%s5 + $0x268] sm:$0xf]
  %v1290 = vld [vmem:[%s5 + $0x26c] sm:$0xf]
  %v1291 = vld [vmem:[%s5 + $0x270] sm:$0xf]
  %v1292 = vld [vmem:[%s5 + $0x274] sm:$0xf]
  %v1293 = vld [vmem:[%s5 + $0x278] sm:$0xf]
  %v1294 = vld [vmem:[%s5 + $0x27c] sm:$0xf]
  %v1295 = vld [vmem:[%s5 + $0x280] sm:$0xf]
  %v1296 = vld [vmem:[%s5 + $0x284] sm:$0xf]
  %v1297 = vld [vmem:[%s5 + $0x288] sm:$0xf]
  %v1298 = vld [vmem:[%s5 + $0x28c] sm:$0xf]
  %v1299 = vld [vmem:[%s5 + $0x290] sm:$0xf]
  %v1300 = vld [vmem:[%s5 + $0x294] sm:$0xf]
  %v1301 = vld [vmem:[%s5 + $0x298] sm:$0xf]
  %v1302 = vld [vmem:[%s5 + $0x29c] sm:$0xf]
  %v1303 = vld [vmem:[%s5 + $0x2a0] sm:$0xf]
  %v1304 = vld [vmem:[%s5 + $0x2a4] sm:$0xf]
  %v1305 = vld [vmem:[%s5 + $0x2a8] sm:$0xf]
  %v1306 = vld [vmem:[%s5 + $0x2ac] sm:$0xf]
  %v1307 = vld [vmem:[%s5 + $0x2b0] sm:$0xf]
  %v1308 = vld [vmem:[%s5 + $0x2b4] sm:$0xf]
  %v1309 = vld [vmem:[%s5 + $0x2b8] sm:$0xf]
  %v1310 = vld [vmem:[%s5 + $0x2bc] sm:$0xf]
  %v1311 = vld [vmem:[%s5 + $0x2c0] sm:$0xf]
  %v1312 = vld [vmem:[%s5 + $0x2c4] sm:$0xf]
  %v1313 = vld [vmem:[%s5 + $0x2c8] sm:$0xf]
  %v1314 = vld [vmem:[%s5 + $0x2cc] sm:$0xf]
  %v1315 = vld [vmem:[%s5 + $0x2d0] sm:$0xf]
  %v1316 = vld [vmem:[%s5 + $0x2d4] sm:$0xf]
  %v1317 = vld [vmem:[%s5 + $0x2d8] sm:$0xf]
  %v1318 = vld [vmem:[%s5 + $0x2dc] sm:$0xf]
  %v1319 = vld [vmem:[%s5 + $0x2e0] sm:$0xf]
  %v1320 = vld [vmem:[%s5 + $0x2e4] sm:$0xf]
  %v1321 = vld [vmem:[%s5 + $0x2e8] sm:$0xf]
  %v1322 = vld [vmem:[%s5 + $0x2ec] sm:$0xf]
  %v1323 = vld [vmem:[%s5 + $0x2f0] sm:$0xf]
  %v1324 = vld [vmem:[%s5 + $0x2f4] sm:$0xf]
  %v1325 = vld [vmem:[%s5 + $0x2f8] sm:$0xf]
  %v1326 = vld [vmem:[%s5 + $0x2fc] sm:$0xf]
  %v1327 = vld [vmem:[%s5 + $0x300] sm:$0xf]
  %v1328 = vld [vmem:[%s5 + $0x304] sm:$0xf]
  %v1329 = vld [vmem:[%s5 + $0x308] sm:$0xf]
  %v1330 = vld [vmem:[%s5 + $0x30c] sm:$0xf]
  %v1331 = vld [vmem:[%s5 + $0x310] sm:$0xf]
  %v1332 = vld [vmem:[%s5 + $0x314] sm:$0xf]
  %v1333 = vld [vmem:[%s5 + $0x318] sm:$0xf]
  %v1334 = vld [vmem:[%s5 + $0x31c] sm:$0xf]
  %v1335 = vld [vmem:[%s5 + $0x320] sm:$0xf]
  %v1336 = vld [vmem:[%s5 + $0x324] sm:$0xf]
  %v1337 = vld [vmem:[%s5 + $0x328] sm:$0xf]
  %v1338 = vld [vmem:[%s5 + $0x32c] sm:$0xf]
  %v1339 = vld [vmem:[%s5 + $0x330] sm:$0xf]
  %v1340 = vld [vmem:[%s5 + $0x334] sm:$0xf]
  %v1341 = vld [vmem:[%s5 + $0x338] sm:$0xf]
  %v1342 = vld [vmem:[%s5 + $0x33c] sm:$0xf]
  %v1343 = vld [vmem:[%s5 + $0x340] sm:$0xf]
  %v1344 = vld [vmem:[%s5 + $0x344] sm:$0xf]
  %v1345 = vld [vmem:[%s5 + $0x348] sm:$0xf]
  %v1346 = vld [vmem:[%s5 + $0x34c] sm:$0xf]
  %v1347 = vld [vmem:[%s5 + $0x350] sm:$0xf]
  %v1348 = vld [vmem:[%s5 + $0x354] sm:$0xf]
  %v1349 = vld [vmem:[%s5 + $0x358] sm:$0xf]
  %v1350 = vld [vmem:[%s5 + $0x35c] sm:$0xf]
  %v1351 = vld [vmem:[%s5 + $0x360] sm:$0xf]
  %v1352 = vld [vmem:[%s5 + $0x364] sm:$0xf]
  %v1353 = vld [vmem:[%s5 + $0x368] sm:$0xf]
  %v1354 = vld [vmem:[%s5 + $0x36c] sm:$0xf]
  %v1355 = vld [vmem:[%s5 + $0x370] sm:$0xf]
  %v1356 = vld [vmem:[%s5 + $0x374] sm:$0xf]
  %v1357 = vld [vmem:[%s5 + $0x378] sm:$0xf]
  %v1358 = vld [vmem:[%s5 + $0x37c] sm:$0xf]
  %v1359 = vld [vmem:[%s5 + $0x380] sm:$0xf]
  %v1360 = vld [vmem:[%s5 + $0x384] sm:$0xf]
  %v1361 = vld [vmem:[%s5 + $0x388] sm:$0xf]
  %v1362 = vld [vmem:[%s5 + $0x38c] sm:$0xf]
  %v1363 = vld [vmem:[%s5 + $0x390] sm:$0xf]
  %v1364 = vld [vmem:[%s5 + $0x394] sm:$0xf]
  %v1365 = vld [vmem:[%s5 + $0x398] sm:$0xf]
  %v1366 = vld [vmem:[%s5 + $0x39c] sm:$0xf]
  %v1367 = vld [vmem:[%s5 + $0x3a0] sm:$0xf]
  %v1368 = vld [vmem:[%s5 + $0x3a4] sm:$0xf]
  %v1369 = vld [vmem:[%s5 + $0x3a8] sm:$0xf]
  %v1370 = vld [vmem:[%s5 + $0x3ac] sm:$0xf]
  %v1371 = vld [vmem:[%s5 + $0x3b0] sm:$0xf]
  %v1372 = vld [vmem:[%s5 + $0x3b4] sm:$0xf]
  %v1373 = vld [vmem:[%s5 + $0x3b8] sm:$0xf]
  %v1374 = vld [vmem:[%s5 + $0x3bc] sm:$0xf]
  %v1375 = vld [vmem:[%s5 + $0x3c0] sm:$0xf]
  %v1376 = vld [vmem:[%s5 + $0x3c4] sm:$0xf]
  %v1377 = vld [vmem:[%s5 + $0x3c8] sm:$0xf]
  %v1378 = vld [vmem:[%s5 + $0x3cc] sm:$0xf]
  %v1379 = vld [vmem:[%s5 + $0x3d0] sm:$0xf]
  %v1380 = vld [vmem:[%s5 + $0x3d4] sm:$0xf]
  %v1381 = vld [vmem:[%s5 + $0x3d8] sm:$0xf]
  %v1382 = vld [vmem:[%s5 + $0x3dc] sm:$0xf]
  %v1383 = vld [vmem:[%s5 + $0x3e0] sm:$0xf]
  %v1384 = vld [vmem:[%s5 + $0x3e4] sm:$0xf]
  %v1385 = vld [vmem:[%s5 + $0x3e8] sm:$0xf]
  %v1386 = vld [vmem:[%s5 + $0x3ec] sm:$0xf]
  %v1387 = vld [vmem:[%s5 + $0x3f0] sm:$0xf]
  %v1388 = vld [vmem:[%s5 + $0x3f4] sm:$0xf]
  %v1389 = vld [vmem:[%s5 + $0x3f8] sm:$0xf]
  %v1390 = vld [vmem:[%s5 + $0x3fc] sm:$0xf]
  %v1407 = vunpack.c.l.b16 %v1135
  %v1408 = vunpack.c.l.b16 %v1136
  %v1409 = vunpack.c.l.b16 %v1137
  %v1410 = vunpack.c.l.b16 %v1138
  %v1411 = vunpack.c.l.b16 %v1139
  %v1412 = vunpack.c.l.b16 %v1140
  %v1413 = vunpack.c.l.b16 %v1141
  %v1414 = vunpack.c.l.b16 %v1142
  %v1415 = vunpack.c.l.b16 %v1143
  %v1416 = vunpack.c.l.b16 %v1144
  %v1417 = vunpack.c.l.b16 %v1145
  %v1418 = vunpack.c.l.b16 %v1146
  %v1419 = vunpack.c.l.b16 %v1147
  %v1420 = vunpack.c.l.b16 %v1148
  %v1421 = vunpack.c.l.b16 %v1149
  %v1422 = vunpack.c.l.b16 %v1150
  %v1423 = vpack.c.b16 %v1408, %v1407
  %v1424 = vpack.c.b16 %v1410, %v1409
  %v1425 = vpack.c.b16 %v1412, %v1411
  %v1426 = vpack.c.b16 %v1414, %v1413
  %v1427 = vpack.c.b16 %v1416, %v1415
  %v1428 = vpack.c.b16 %v1418, %v1417
  %v1429 = vpack.c.b16 %v1420, %v1419
  %v1430 = vpack.c.b16 %v1422, %v1421
  %1439 = vmatprep.subr.bf16.mxu0 0
  %1440 = vmatpush1.bf16.msra.mxu0 %v1430
  %1441 = vmatprep.subr.bf16.mxu0 0
  %1442 = vmatpush1.bf16.msra.mxu0 %v1429
  %1443 = vmatprep.subr.bf16.mxu0 0
  %1444 = vmatpush1.bf16.msra.mxu0 %v1428
  %1445 = vmatprep.subr.bf16.mxu0 0
  %1446 = vmatpush1.bf16.msra.mxu0 %v1427
  %1447 = vmatprep.subr.bf16.mxu0 0
  %1448 = vmatpush1.bf16.msra.mxu0 %v1426
  %1449 = vmatprep.subr.bf16.mxu0 0
  %1450 = vmatpush1.bf16.msra.mxu0 %v1425
  %1451 = vmatprep.subr.bf16.mxu0 0
  %1452 = vmatpush1.bf16.msra.mxu0 %v1424
  %1453 = vmatprep.subr.bf16.mxu0 0
  %1454 = vmatpush1.bf16.msra.mxu0 %v1423
  %1455 = vmatprep.subr.bf16.mxu0 0
  %1456 = vmatpush2.bf16.msra.mxu0 0
  %1457 = vmatprep.subr.bf16.mxu0 0
  %1458 = vmatpush2.bf16.msra.mxu0 0
  %1459 = vmatprep.subr.bf16.mxu0 0
  %1460 = vmatpush2.bf16.msra.mxu0 0
  %1461 = vmatprep.subr.bf16.mxu0 0
  %1462 = vmatpush2.bf16.msra.mxu0 0
  %1463 = vmatprep.subr.bf16.mxu0 0
  %1464 = vmatpush2.bf16.msra.mxu0 0
  %1465 = vmatprep.subr.bf16.mxu0 0
  %1466 = vmatpush2.bf16.msra.mxu0 0
  %1467 = vmatprep.subr.bf16.mxu0 0
  %1468 = vmatpush2.bf16.msra.mxu0 0
  %1469 = vmatprep.subr.bf16.mxu0 0
  %1470 = vmatpush2.bf16.msra.mxu0 0
  %1471 = vmatprep.mubr.bf16.mxu0 0
  %1472 = vmatmul.mubr.bf16.gmra.mxu0 %v1119
  %v1473 = vpop.f32.mrf.mxu0
  %v1474 = vadd.f32 0.0, %v1473
  %v1475 = vpop.f32.mrf.mxu0
  %v1476 = vpop.f32.mrf.mxu0
  %v1477 = vpop.f32.mrf.mxu0
  %1478 = vdwg.mxu0
  %v1495 = vunpack.c.l.b16 %v1151
  %v1496 = vunpack.c.l.b16 %v1152
  %v1497 = vunpack.c.l.b16 %v1153
  %v1498 = vunpack.c.l.b16 %v1154
  %v1499 = vunpack.c.l.b16 %v1155
  %v1500 = vunpack.c.l.b16 %v1156
  %v1501 = vunpack.c.l.b16 %v1157
  %v1502 = vunpack.c.l.b16 %v1158
  %v1503 = vunpack.c.l.b16 %v1159
  %v1504 = vunpack.c.l.b16 %v1160
  %v1505 = vunpack.c.l.b16 %v1161
  %v1506 = vunpack.c.l.b16 %v1162
  %v1507 = vunpack.c.l.b16 %v1163
  %v1508 = vunpack.c.l.b16 %v1164
  %v1509 = vunpack.c.l.b16 %v1165
  %v1510 = vunpack.c.l.b16 %v1166
  %v1511 = vpack.c.b16 %v1496, %v1495
  %v1512 = vpack.c.b16 %v1498, %v1497
  %v1513 = vpack.c.b16 %v1500, %v1499
  %v1514 = vpack.c.b16 %v1502, %v1501
  %v1515 = vpack.c.b16 %v1504, %v1503
  %v1516 = vpack.c.b16 %v1506, %v1505
  %v1517 = vpack.c.b16 %v1508, %v1507
  %v1518 = vpack.c.b16 %v1510, %v1509
  %1527 = vmatprep.subr.bf16.mxu0 0
  %1528 = vmatpush1.bf16.msra.mxu0 %v1518
  %1529 = vmatprep.subr.bf16.mxu0 0
  %1530 = vmatpush1.bf16.msra.mxu0 %v1517
  %1531 = vmatprep.subr.bf16.mxu0 0
  %1532 = vmatpush1.bf16.msra.mxu0 %v1516
  %1533 = vmatprep.subr.bf16.mxu0 0
  %1534 = vmatpush1.bf16.msra.mxu0 %v1515
  %1535 = vmatprep.subr.bf16.mxu0 0
  %1536 = vmatpush1.bf16.msra.mxu0 %v1514
  %1537 = vmatprep.subr.bf16.mxu0 0
  %1538 = vmatpush1.bf16.msra.mxu0 %v1513
  %1539 = vmatprep.subr.bf16.mxu0 0
  %1540 = vmatpush1.bf16.msra.mxu0 %v1512
  %1541 = vmatprep.subr.bf16.mxu0 0
  %1542 = vmatpush1.bf16.msra.mxu0 %v1511
  %1543 = vmatprep.subr.bf16.mxu0 0
  %1544 = vmatpush2.bf16.msra.mxu0 0
  %1545 = vmatprep.subr.bf16.mxu0 0
  %1546 = vmatpush2.bf16.msra.mxu0 0
  %1547 = vmatprep.subr.bf16.mxu0 0
  %1548 = vmatpush2.bf16.msra.mxu0 0
  %1549 = vmatprep.subr.bf16.mxu0 0
  %1550 = vmatpush2.bf16.msra.mxu0 0
  %1551 = vmatprep.subr.bf16.mxu0 0
  %1552 = vmatpush2.bf16.msra.mxu0 0
  %1553 = vmatprep.subr.bf16.mxu0 0
  %1554 = vmatpush2.bf16.msra.mxu0 0
  %1555 = vmatprep.subr.bf16.mxu0 0
  %1556 = vmatpush2.bf16.msra.mxu0 0
  %1557 = vmatprep.subr.bf16.mxu0 0
  %1558 = vmatpush2.bf16.msra.mxu0 0
  %1559 = vmatprep.mubr.bf16.mxu0 0
  %1560 = vmatmul.mubr.bf16.gmra.mxu0 %v1120
  %v1561 = vpop.f32.mrf.mxu0
  %v1562 = vadd.f32 0.0, %v1561
  %v1563 = vpop.f32.mrf.mxu0
  %v1564 = vpop.f32.mrf.mxu0
  %v1565 = vpop.f32.mrf.mxu0
  %1566 = vdwg.mxu0
  %v1583 = vunpack.c.l.b16 %v1167
  %v1584 = vunpack.c.l.b16 %v1168
  %v1585 = vunpack.c.l.b16 %v1169
  %v1586 = vunpack.c.l.b16 %v1170
  %v1587 = vunpack.c.l.b16 %v1171
  %v1588 = vunpack.c.l.b16 %v1172
  %v1589 = vunpack.c.l.b16 %v1173
  %v1590 = vunpack.c.l.b16 %v1174
  %v1591 = vunpack.c.l.b16 %v1175
  %v1592 = vunpack.c.l.b16 %v1176
  %v1593 = vunpack.c.l.b16 %v1177
  %v1594 = vunpack.c.l.b16 %v1178
  %v1595 = vunpack.c.l.b16 %v1179
  %v1596 = vunpack.c.l.b16 %v1180
  %v1597 = vunpack.c.l.b16 %v1181
  %v1598 = vunpack.c.l.b16 %v1182
  %v1599 = vpack.c.b16 %v1584, %v1583
  %v1600 = vpack.c.b16 %v1586, %v1585
  %v1601 = vpack.c.b16 %v1588, %v1587
  %v1602 = vpack.c.b16 %v1590, %v1589
  %v1603 = vpack.c.b16 %v1592, %v1591
  %v1604 = vpack.c.b16 %v1594, %v1593
  %v1605 = vpack.c.b16 %v1596, %v1595
  %v1606 = vpack.c.b16 %v1598, %v1597
  %1615 = vmatprep.subr.bf16.mxu0 0
  %1616 = vmatpush1.bf16.msra.mxu0 %v1606
  %1617 = vmatprep.subr.bf16.mxu0 0
  %1618 = vmatpush1.bf16.msra.mxu0 %v1605
  %1619 = vmatprep.subr.bf16.mxu0 0
  %1620 = vmatpush1.bf16.msra.mxu0 %v1604
  %1621 = vmatprep.subr.bf16.mxu0 0
  %1622 = vmatpush1.bf16.msra.mxu0 %v1603
  %1623 = vmatprep.subr.bf16.mxu0 0
  %1624 = vmatpush1.bf16.msra.mxu0 %v1602
  %1625 = vmatprep.subr.bf16.mxu0 0
  %1626 = vmatpush1.bf16.msra.mxu0 %v1601
  %1627 = vmatprep.subr.bf16.mxu0 0
  %1628 = vmatpush1.bf16.msra.mxu0 %v1600
  %1629 = vmatprep.subr.bf16.mxu0 0
  %1630 = vmatpush1.bf16.msra.mxu0 %v1599
  %1631 = vmatprep.subr.bf16.mxu0 0
  %1632 = vmatpush2.bf16.msra.mxu0 0
  %1633 = vmatprep.subr.bf16.mxu0 0
  %1634 = vmatpush2.bf16.msra.mxu0 0
  %1635 = vmatprep.subr.bf16.mxu0 0
  %1636 = vmatpush2.bf16.msra.mxu0 0
  %1637 = vmatprep.subr.bf16.mxu0 0
  %1638 = vmatpush2.bf16.msra.mxu0 0
  %1639 = vmatprep.subr.bf16.mxu0 0
  %1640 = vmatpush2.bf16.msra.mxu0 0
  %1641 = vmatprep.subr.bf16.mxu0 0
  %1642 = vmatpush2.bf16.msra.mxu0 0
  %1643 = vmatprep.subr.bf16.mxu0 0
  %1644 = vmatpush2.bf16.msra.mxu0 0
  %1645 = vmatprep.subr.bf16.mxu0 0
  %1646 = vmatpush2.bf16.msra.mxu0 0
  %1647 = vmatprep.mubr.bf16.mxu0 0
  %1648 = vmatmul.mubr.bf16.gmra.mxu0 %v1121
  %v1649 = vpop.f32.mrf.mxu0
  %v1650 = vadd.f32 0.0, %v1649
  %v1651 = vpop.f32.mrf.mxu0
  %v1652 = vpop.f32.mrf.mxu0
  %v1653 = vpop.f32.mrf.mxu0
  %1654 = vdwg.mxu0
  %v1671 = vunpack.c.l.b16 %v1183
  %v1672 = vunpack.c.l.b16 %v1184
  %v1673 = vunpack.c.l.b16 %v1185
  %v1674 = vunpack.c.l.b16 %v1186
  %v1675 = vunpack.c.l.b16 %v1187
  %v1676 = vunpack.c.l.b16 %v1188
  %v1677 = vunpack.c.l.b16 %v1189
  %v1678 = vunpack.c.l.b16 %v1190
  %v1679 = vunpack.c.l.b16 %v1191
  %v1680 = vunpack.c.l.b16 %v1192
  %v1681 = vunpack.c.l.b16 %v1193
  %v1682 = vunpack.c.l.b16 %v1194
  %v1683 = vunpack.c.l.b16 %v1195
  %v1684 = vunpack.c.l.b16 %v1196
  %v1685 = vunpack.c.l.b16 %v1197
  %v1686 = vunpack.c.l.b16 %v1198
  %v1687 = vpack.c.b16 %v1672, %v1671
  %v1688 = vpack.c.b16 %v1674, %v1673
  %v1689 = vpack.c.b16 %v1676, %v1675
  %v1690 = vpack.c.b16 %v1678, %v1677
  %v1691 = vpack.c.b16 %v1680, %v1679
  %v1692 = vpack.c.b16 %v1682, %v1681
  %v1693 = vpack.c.b16 %v1684, %v1683
  %v1694 = vpack.c.b16 %v1686, %v1685
  %1703 = vmatprep.subr.bf16.mxu0 0
  %1704 = vmatpush1.bf16.msra.mxu0 %v1694
  %1705 = vmatprep.subr.bf16.mxu0 0
  %1706 = vmatpush1.bf16.msra.mxu0 %v1693
  %1707 = vmatprep.subr.bf16.mxu0 0
  %1708 = vmatpush1.bf16.msra.mxu0 %v1692
  %1709 = vmatprep.subr.bf16.mxu0 0
  %1710 = vmatpush1.bf16.msra.mxu0 %v1691
  %1711 = vmatprep.subr.bf16.mxu0 0
  %1712 = vmatpush1.bf16.msra.mxu0 %v1690
  %1713 = vmatprep.subr.bf16.mxu0 0
  %1714 = vmatpush1.bf16.msra.mxu0 %v1689
  %1715 = vmatprep.subr.bf16.mxu0 0
  %1716 = vmatpush1.bf16.msra.mxu0 %v1688
  %1717 = vmatprep.subr.bf16.mxu0 0
  %1718 = vmatpush1.bf16.msra.mxu0 %v1687
  %1719 = vmatprep.subr.bf16.mxu0 0
  %1720 = vmatpush2.bf16.msra.mxu0 0
  %1721 = vmatprep.subr.bf16.mxu0 0
  %1722 = vmatpush2.bf16.msra.mxu0 0
  %1723 = vmatprep.subr.bf16.mxu0 0
  %1724 = vmatpush2.bf16.msra.mxu0 0
  %1725 = vmatprep.subr.bf16.mxu0 0
  %1726 = vmatpush2.bf16.msra.mxu0 0
  %1727 = vmatprep.subr.bf16.mxu0 0
  %1728 = vmatpush2.bf16.msra.mxu0 0
  %1729 = vmatprep.subr.bf16.mxu0 0
  %1730 = vmatpush2.bf16.msra.mxu0 0
  %1731 = vmatprep.subr.bf16.mxu0 0
  %1732 = vmatpush2.bf16.msra.mxu0 0
  %1733 = vmatprep.subr.bf16.mxu0 0
  %1734 = vmatpush2.bf16.msra.mxu0 0
  %1735 = vmatprep.mubr.bf16.mxu0 0
  %1736 = vmatmul.mubr.bf16.gmra.mxu0 %v1122
  %v1737 = vpop.f32.mrf.mxu0
  %v1738 = vadd.f32 0.0, %v1737
  %v1739 = vpop.f32.mrf.mxu0
  %v1740 = vpop.f32.mrf.mxu0
  %v1741 = vpop.f32.mrf.mxu0
  %1742 = vdwg.mxu0
  %v1759 = vunpack.c.l.b16 %v1199
  %v1760 = vunpack.c.l.b16 %v1200
  %v1761 = vunpack.c.l.b16 %v1201
  %v1762 = vunpack.c.l.b16 %v1202
  %v1763 = vunpack.c.l.b16 %v1203
  %v1764 = vunpack.c.l.b16 %v1204
  %v1765 = vunpack.c.l.b16 %v1205
  %v1766 = vunpack.c.l.b16 %v1206
  %v1767 = vunpack.c.l.b16 %v1207
  %v1768 = vunpack.c.l.b16 %v1208
  %v1769 = vunpack.c.l.b16 %v1209
  %v1770 = vunpack.c.l.b16 %v1210
  %v1771 = vunpack.c.l.b16 %v1211
  %v1772 = vunpack.c.l.b16 %v1212
  %v1773 = vunpack.c.l.b16 %v1213
  %v1774 = vunpack.c.l.b16 %v1214
  %v1775 = vpack.c.b16 %v1760, %v1759
  %v1776 = vpack.c.b16 %v1762, %v1761
  %v1777 = vpack.c.b16 %v1764, %v1763
  %v1778 = vpack.c.b16 %v1766, %v1765
  %v1779 = vpack.c.b16 %v1768, %v1767
  %v1780 = vpack.c.b16 %v1770, %v1769
  %v1781 = vpack.c.b16 %v1772, %v1771
  %v1782 = vpack.c.b16 %v1774, %v1773
  %1791 = vmatprep.subr.bf16.mxu0 0
  %1792 = vmatpush1.bf16.msra.mxu0 %v1782
  %1793 = vmatprep.subr.bf16.mxu0 0
  %1794 = vmatpush1.bf16.msra.mxu0 %v1781
  %1795 = vmatprep.subr.bf16.mxu0 0
  %1796 = vmatpush1.bf16.msra.mxu0 %v1780
  %1797 = vmatprep.subr.bf16.mxu0 0
  %1798 = vmatpush1.bf16.msra.mxu0 %v1779
  %1799 = vmatprep.subr.bf16.mxu0 0
  %1800 = vmatpush1.bf16.msra.mxu0 %v1778
  %1801 = vmatprep.subr.bf16.mxu0 0
  %1802 = vmatpush1.bf16.msra.mxu0 %v1777
  %1803 = vmatprep.subr.bf16.mxu0 0
  %1804 = vmatpush1.bf16.msra.mxu0 %v1776
  %1805 = vmatprep.subr.bf16.mxu0 0
  %1806 = vmatpush1.bf16.msra.mxu0 %v1775
  %1807 = vmatprep.subr.bf16.mxu0 0
  %1808 = vmatpush2.bf16.msra.mxu0 0
  %1809 = vmatprep.subr.bf16.mxu0 0
  %1810 = vmatpush2.bf16.msra.mxu0 0
  %1811 = vmatprep.subr.bf16.mxu0 0
  %1812 = vmatpush2.bf16.msra.mxu0 0
  %1813 = vmatprep.subr.bf16.mxu0 0
  %1814 = vmatpush2.bf16.msra.mxu0 0
  %1815 = vmatprep.subr.bf16.mxu0 0
  %1816 = vmatpush2.bf16.msra.mxu0 0
  %1817 = vmatprep.subr.bf16.mxu0 0
  %1818 = vmatpush2.bf16.msra.mxu0 0
  %1819 = vmatprep.subr.bf16.mxu0 0
  %1820 = vmatpush2.bf16.msra.mxu0 0
  %1821 = vmatprep.subr.bf16.mxu0 0
  %1822 = vmatpush2.bf16.msra.mxu0 0
  %1823 = vmatprep.mubr.bf16.mxu0 0
  %1824 = vmatmul.mubr.bf16.gmra.mxu0 %v1123
  %v1825 = vpop.f32.mrf.mxu0
  %v1826 = vadd.f32 0.0, %v1825
  %v1827 = vpop.f32.mrf.mxu0
  %v1828 = vpop.f32.mrf.mxu0
  %v1829 = vpop.f32.mrf.mxu0
  %1830 = vdwg.mxu0
  %v1847 = vunpack.c.l.b16 %v1215
  %v1848 = vunpack.c.l.b16 %v1216
  %v1849 = vunpack.c.l.b16 %v1217
  %v1850 = vunpack.c.l.b16 %v1218
  %v1851 = vunpack.c.l.b16 %v1219
  %v1852 = vunpack.c.l.b16 %v1220
  %v1853 = vunpack.c.l.b16 %v1221
  %v1854 = vunpack.c.l.b16 %v1222
  %v1855 = vunpack.c.l.b16 %v1223
  %v1856 = vunpack.c.l.b16 %v1224
  %v1857 = vunpack.c.l.b16 %v1225
  %v1858 = vunpack.c.l.b16 %v1226
  %v1859 = vunpack.c.l.b16 %v1227
  %v1860 = vunpack.c.l.b16 %v1228
  %v1861 = vunpack.c.l.b16 %v1229
  %v1862 = vunpack.c.l.b16 %v1230
  %v1863 = vpack.c.b16 %v1848, %v1847
  %v1864 = vpack.c.b16 %v1850, %v1849
  %v1865 = vpack.c.b16 %v1852, %v1851
  %v1866 = vpack.c.b16 %v1854, %v1853
  %v1867 = vpack.c.b16 %v1856, %v1855
  %v1868 = vpack.c.b16 %v1858, %v1857
  %v1869 = vpack.c.b16 %v1860, %v1859
  %v1870 = vpack.c.b16 %v1862, %v1861
  %1879 = vmatprep.subr.bf16.mxu0 0
  %1880 = vmatpush1.bf16.msra.mxu0 %v1870
  %1881 = vmatprep.subr.bf16.mxu0 0
  %1882 = vmatpush1.bf16.msra.mxu0 %v1869
  %1883 = vmatprep.subr.bf16.mxu0 0
  %1884 = vmatpush1.bf16.msra.mxu0 %v1868
  %1885 = vmatprep.subr.bf16.mxu0 0
  %1886 = vmatpush1.bf16.msra.mxu0 %v1867
  %1887 = vmatprep.subr.bf16.mxu0 0
  %1888 = vmatpush1.bf16.msra.mxu0 %v1866
  %1889 = vmatprep.subr.bf16.mxu0 0
  %1890 = vmatpush1.bf16.msra.mxu0 %v1865
  %1891 = vmatprep.subr.bf16.mxu0 0
  %1892 = vmatpush1.bf16.msra.mxu0 %v1864
  %1893 = vmatprep.subr.bf16.mxu0 0
  %1894 = vmatpush1.bf16.msra.mxu0 %v1863
  %1895 = vmatprep.subr.bf16.mxu0 0
  %1896 = vmatpush2.bf16.msra.mxu0 0
  %1897 = vmatprep.subr.bf16.mxu0 0
  %1898 = vmatpush2.bf16.msra.mxu0 0
  %1899 = vmatprep.subr.bf16.mxu0 0
  %1900 = vmatpush2.bf16.msra.mxu0 0
  %1901 = vmatprep.subr.bf16.mxu0 0
  %1902 = vmatpush2.bf16.msra.mxu0 0
  %1903 = vmatprep.subr.bf16.mxu0 0
  %1904 = vmatpush2.bf16.msra.mxu0 0
  %1905 = vmatprep.subr.bf16.mxu0 0
  %1906 = vmatpush2.bf16.msra.mxu0 0
  %1907 = vmatprep.subr.bf16.mxu0 0
  %1908 = vmatpush2.bf16.msra.mxu0 0
  %1909 = vmatprep.subr.bf16.mxu0 0
  %1910 = vmatpush2.bf16.msra.mxu0 0
  %1911 = vmatprep.mubr.bf16.mxu0 0
  %1912 = vmatmul.mubr.bf16.gmra.mxu0 %v1124
  %v1913 = vpop.f32.mrf.mxu0
  %v1914 = vadd.f32 0.0, %v1913
  %v1915 = vpop.f32.mrf.mxu0
  %v1916 = vpop.f32.mrf.mxu0
  %v1917 = vpop.f32.mrf.mxu0
  %1918 = vdwg.mxu0
  %v1935 = vunpack.c.l.b16 %v1231
  %v1936 = vunpack.c.l.b16 %v1232
  %v1937 = vunpack.c.l.b16 %v1233
  %v1938 = vunpack.c.l.b16 %v1234
  %v1939 = vunpack.c.l.b16 %v1235
  %v1940 = vunpack.c.l.b16 %v1236
  %v1941 = vunpack.c.l.b16 %v1237
  %v1942 = vunpack.c.l.b16 %v1238
  %v1943 = vunpack.c.l.b16 %v1239
  %v1944 = vunpack.c.l.b16 %v1240
  %v1945 = vunpack.c.l.b16 %v1241
  %v1946 = vunpack.c.l.b16 %v1242
  %v1947 = vunpack.c.l.b16 %v1243
  %v1948 = vunpack.c.l.b16 %v1244
  %v1949 = vunpack.c.l.b16 %v1245
  %v1950 = vunpack.c.l.b16 %v1246
  %v1951 = vpack.c.b16 %v1936, %v1935
  %v1952 = vpack.c.b16 %v1938, %v1937
  %v1953 = vpack.c.b16 %v1940, %v1939
  %v1954 = vpack.c.b16 %v1942, %v1941
  %v1955 = vpack.c.b16 %v1944, %v1943
  %v1956 = vpack.c.b16 %v1946, %v1945
  %v1957 = vpack.c.b16 %v1948, %v1947
  %v1958 = vpack.c.b16 %v1950, %v1949
  %1967 = vmatprep.subr.bf16.mxu0 0
  %1968 = vmatpush1.bf16.msra.mxu0 %v1958
  %1969 = vmatprep.subr.bf16.mxu0 0
  %1970 = vmatpush1.bf16.msra.mxu0 %v1957
  %1971 = vmatprep.subr.bf16.mxu0 0
  %1972 = vmatpush1.bf16.msra.mxu0 %v1956
  %1973 = vmatprep.subr.bf16.mxu0 0
  %1974 = vmatpush1.bf16.msra.mxu0 %v1955
  %1975 = vmatprep.subr.bf16.mxu0 0
  %1976 = vmatpush1.bf16.msra.mxu0 %v1954
  %1977 = vmatprep.subr.bf16.mxu0 0
  %1978 = vmatpush1.bf16.msra.mxu0 %v1953
  %1979 = vmatprep.subr.bf16.mxu0 0
  %1980 = vmatpush1.bf16.msra.mxu0 %v1952
  %1981 = vmatprep.subr.bf16.mxu0 0
  %1982 = vmatpush1.bf16.msra.mxu0 %v1951
  %1983 = vmatprep.subr.bf16.mxu0 0
  %1984 = vmatpush2.bf16.msra.mxu0 0
  %1985 = vmatprep.subr.bf16.mxu0 0
  %1986 = vmatpush2.bf16.msra.mxu0 0
  %1987 = vmatprep.subr.bf16.mxu0 0
  %1988 = vmatpush2.bf16.msra.mxu0 0
  %1989 = vmatprep.subr.bf16.mxu0 0
  %1990 = vmatpush2.bf16.msra.mxu0 0
  %1991 = vmatprep.subr.bf16.mxu0 0
  %1992 = vmatpush2.bf16.msra.mxu0 0
  %1993 = vmatprep.subr.bf16.mxu0 0
  %1994 = vmatpush2.bf16.msra.mxu0 0
  %1995 = vmatprep.subr.bf16.mxu0 0
  %1996 = vmatpush2.bf16.msra.mxu0 0
  %1997 = vmatprep.subr.bf16.mxu0 0
  %1998 = vmatpush2.bf16.msra.mxu0 0
  %1999 = vmatprep.mubr.bf16.mxu0 0
  %2000 = vmatmul.mubr.bf16.gmra.mxu0 %v1125
  %v2001 = vpop.f32.mrf.mxu0
  %v2002 = vadd.f32 0.0, %v2001
  %v2003 = vpop.f32.mrf.mxu0
  %v2004 = vpop.f32.mrf.mxu0
  %v2005 = vpop.f32.mrf.mxu0
  %2006 = vdwg.mxu0
  %v2023 = vunpack.c.l.b16 %v1247
  %v2024 = vunpack.c.l.b16 %v1248
  %v2025 = vunpack.c.l.b16 %v1249
  %v2026 = vunpack.c.l.b16 %v1250
  %v2027 = vunpack.c.l.b16 %v1251
  %v2028 = vunpack.c.l.b16 %v1252
  %v2029 = vunpack.c.l.b16 %v1253
  %v2030 = vunpack.c.l.b16 %v1254
  %v2031 = vunpack.c.l.b16 %v1255
  %v2032 = vunpack.c.l.b16 %v1256
  %v2033 = vunpack.c.l.b16 %v1257
  %v2034 = vunpack.c.l.b16 %v1258
  %v2035 = vunpack.c.l.b16 %v1259
  %v2036 = vunpack.c.l.b16 %v1260
  %v2037 = vunpack.c.l.b16 %v1261
  %v2038 = vunpack.c.l.b16 %v1262
  %v2039 = vpack.c.b16 %v2024, %v2023
  %v2040 = vpack.c.b16 %v2026, %v2025
  %v2041 = vpack.c.b16 %v2028, %v2027
  %v2042 = vpack.c.b16 %v2030, %v2029
  %v2043 = vpack.c.b16 %v2032, %v2031
  %v2044 = vpack.c.b16 %v2034, %v2033
  %v2045 = vpack.c.b16 %v2036, %v2035
  %v2046 = vpack.c.b16 %v2038, %v2037
  %2055 = vmatprep.subr.bf16.mxu0 0
  %2056 = vmatpush1.bf16.msra.mxu0 %v2046
  %2057 = vmatprep.subr.bf16.mxu0 0
  %2058 = vmatpush1.bf16.msra.mxu0 %v2045
  %2059 = vmatprep.subr.bf16.mxu0 0
  %2060 = vmatpush1.bf16.msra.mxu0 %v2044
  %2061 = vmatprep.subr.bf16.mxu0 0
  %2062 = vmatpush1.bf16.msra.mxu0 %v2043
  %2063 = vmatprep.subr.bf16.mxu0 0
  %2064 = vmatpush1.bf16.msra.mxu0 %v2042
  %2065 = vmatprep.subr.bf16.mxu0 0
  %2066 = vmatpush1.bf16.msra.mxu0 %v2041
  %2067 = vmatprep.subr.bf16.mxu0 0
  %2068 = vmatpush1.bf16.msra.mxu0 %v2040
  %2069 = vmatprep.subr.bf16.mxu0 0
  %2070 = vmatpush1.bf16.msra.mxu0 %v2039
  %2071 = vmatprep.subr.bf16.mxu0 0
  %2072 = vmatpush2.bf16.msra.mxu0 0
  %2073 = vmatprep.subr.bf16.mxu0 0
  %2074 = vmatpush2.bf16.msra.mxu0 0
  %2075 = vmatprep.subr.bf16.mxu0 0
  %2076 = vmatpush2.bf16.msra.mxu0 0
  %2077 = vmatprep.subr.bf16.mxu0 0
  %2078 = vmatpush2.bf16.msra.mxu0 0
  %2079 = vmatprep.subr.bf16.mxu0 0
  %2080 = vmatpush2.bf16.msra.mxu0 0
  %2081 = vmatprep.subr.bf16.mxu0 0
  %2082 = vmatpush2.bf16.msra.mxu0 0
  %2083 = vmatprep.subr.bf16.mxu0 0
  %2084 = vmatpush2.bf16.msra.mxu0 0
  %2085 = vmatprep.subr.bf16.mxu0 0
  %2086 = vmatpush2.bf16.msra.mxu0 0
  %2087 = vmatprep.mubr.bf16.mxu0 0
  %2088 = vmatmul.mubr.bf16.gmra.mxu0 %v1126
  %v2089 = vpop.f32.mrf.mxu0
  %v2090 = vadd.f32 0.0, %v2089
  %v2091 = vpop.f32.mrf.mxu0
  %v2092 = vpop.f32.mrf.mxu0
  %v2093 = vpop.f32.mrf.mxu0
  %2094 = vdwg.mxu0
  %v2111 = vunpack.c.l.b16 %v1263
  %v2112 = vunpack.c.l.b16 %v1264
  %v2113 = vunpack.c.l.b16 %v1265
  %v2114 = vunpack.c.l.b16 %v1266
  %v2115 = vunpack.c.l.b16 %v1267
  %v2116 = vunpack.c.l.b16 %v1268
  %v2117 = vunpack.c.l.b16 %v1269
  %v2118 = vunpack.c.l.b16 %v1270
  %v2119 = vunpack.c.l.b16 %v1271
  %v2120 = vunpack.c.l.b16 %v1272
  %v2121 = vunpack.c.l.b16 %v1273
  %v2122 = vunpack.c.l.b16 %v1274
  %v2123 = vunpack.c.l.b16 %v1275
  %v2124 = vunpack.c.l.b16 %v1276
  %v2125 = vunpack.c.l.b16 %v1277
  %v2126 = vunpack.c.l.b16 %v1278
  %v2127 = vpack.c.b16 %v2112, %v2111
  %v2128 = vpack.c.b16 %v2114, %v2113
  %v2129 = vpack.c.b16 %v2116, %v2115
  %v2130 = vpack.c.b16 %v2118, %v2117
  %v2131 = vpack.c.b16 %v2120, %v2119
  %v2132 = vpack.c.b16 %v2122, %v2121
  %v2133 = vpack.c.b16 %v2124, %v2123
  %v2134 = vpack.c.b16 %v2126, %v2125
  %2143 = vmatprep.subr.bf16.mxu0 0
  %2144 = vmatpush1.bf16.msra.mxu0 %v2134
  %2145 = vmatprep.subr.bf16.mxu0 0
  %2146 = vmatpush1.bf16.msra.mxu0 %v2133
  %2147 = vmatprep.subr.bf16.mxu0 0
  %2148 = vmatpush1.bf16.msra.mxu0 %v2132
  %2149 = vmatprep.subr.bf16.mxu0 0
  %2150 = vmatpush1.bf16.msra.mxu0 %v2131
  %2151 = vmatprep.subr.bf16.mxu0 0
  %2152 = vmatpush1.bf16.msra.mxu0 %v2130
  %2153 = vmatprep.subr.bf16.mxu0 0
  %2154 = vmatpush1.bf16.msra.mxu0 %v2129
  %2155 = vmatprep.subr.bf16.mxu0 0
  %2156 = vmatpush1.bf16.msra.mxu0 %v2128
  %2157 = vmatprep.subr.bf16.mxu0 0
  %2158 = vmatpush1.bf16.msra.mxu0 %v2127
  %2159 = vmatprep.subr.bf16.mxu0 0
  %2160 = vmatpush2.bf16.msra.mxu0 0
  %2161 = vmatprep.subr.bf16.mxu0 0
  %2162 = vmatpush2.bf16.msra.mxu0 0
  %2163 = vmatprep.subr.bf16.mxu0 0
  %2164 = vmatpush2.bf16.msra.mxu0 0
  %2165 = vmatprep.subr.bf16.mxu0 0
  %2166 = vmatpush2.bf16.msra.mxu0 0
  %2167 = vmatprep.subr.bf16.mxu0 0
  %2168 = vmatpush2.bf16.msra.mxu0 0
  %2169 = vmatprep.subr.bf16.mxu0 0
  %2170 = vmatpush2.bf16.msra.mxu0 0
  %2171 = vmatprep.subr.bf16.mxu0 0
  %2172 = vmatpush2.bf16.msra.mxu0 0
  %2173 = vmatprep.subr.bf16.mxu0 0
  %2174 = vmatpush2.bf16.msra.mxu0 0
  %2175 = vmatprep.mubr.bf16.mxu0 0
  %2176 = vmatmul.mubr.bf16.gmra.mxu0 %v1127
  %v2177 = vpop.f32.mrf.mxu0
  %v2178 = vadd.f32 0.0, %v2177
  %v2179 = vpop.f32.mrf.mxu0
  %v2180 = vpop.f32.mrf.mxu0
  %v2181 = vpop.f32.mrf.mxu0
  %2182 = vdwg.mxu0
  %v2199 = vunpack.c.l.b16 %v1279
  %v2200 = vunpack.c.l.b16 %v1280
  %v2201 = vunpack.c.l.b16 %v1281
  %v2202 = vunpack.c.l.b16 %v1282
  %v2203 = vunpack.c.l.b16 %v1283
  %v2204 = vunpack.c.l.b16 %v1284
  %v2205 = vunpack.c.l.b16 %v1285
  %v2206 = vunpack.c.l.b16 %v1286
  %v2207 = vunpack.c.l.b16 %v1287
  %v2208 = vunpack.c.l.b16 %v1288
  %v2209 = vunpack.c.l.b16 %v1289
  %v2210 = vunpack.c.l.b16 %v1290
  %v2211 = vunpack.c.l.b16 %v1291
  %v2212 = vunpack.c.l.b16 %v1292
  %v2213 = vunpack.c.l.b16 %v1293
  %v2214 = vunpack.c.l.b16 %v1294
  %v2215 = vpack.c.b16 %v2200, %v2199
  %v2216 = vpack.c.b16 %v2202, %v2201
  %v2217 = vpack.c.b16 %v2204, %v2203
  %v2218 = vpack.c.b16 %v2206, %v2205
  %v2219 = vpack.c.b16 %v2208, %v2207
  %v2220 = vpack.c.b16 %v2210, %v2209
  %v2221 = vpack.c.b16 %v2212, %v2211
  %v2222 = vpack.c.b16 %v2214, %v2213
  %2231 = vmatprep.subr.bf16.mxu0 0
  %2232 = vmatpush1.bf16.msra.mxu0 %v2222
  %2233 = vmatprep.subr.bf16.mxu0 0
  %2234 = vmatpush1.bf16.msra.mxu0 %v2221
  %2235 = vmatprep.subr.bf16.mxu0 0
  %2236 = vmatpush1.bf16.msra.mxu0 %v2220
  %2237 = vmatprep.subr.bf16.mxu0 0
  %2238 = vmatpush1.bf16.msra.mxu0 %v2219
  %2239 = vmatprep.subr.bf16.mxu0 0
  %2240 = vmatpush1.bf16.msra.mxu0 %v2218
  %2241 = vmatprep.subr.bf16.mxu0 0
  %2242 = vmatpush1.bf16.msra.mxu0 %v2217
  %2243 = vmatprep.subr.bf16.mxu0 0
  %2244 = vmatpush1.bf16.msra.mxu0 %v2216
  %2245 = vmatprep.subr.bf16.mxu0 0
  %2246 = vmatpush1.bf16.msra.mxu0 %v2215
  %2247 = vmatprep.subr.bf16.mxu0 0
  %2248 = vmatpush2.bf16.msra.mxu0 0
  %2249 = vmatprep.subr.bf16.mxu0 0
  %2250 = vmatpush2.bf16.msra.mxu0 0
  %2251 = vmatprep.subr.bf16.mxu0 0
  %2252 = vmatpush2.bf16.msra.mxu0 0
  %2253 = vmatprep.subr.bf16.mxu0 0
  %2254 = vmatpush2.bf16.msra.mxu0 0
  %2255 = vmatprep.subr.bf16.mxu0 0
  %2256 = vmatpush2.bf16.msra.mxu0 0
  %2257 = vmatprep.subr.bf16.mxu0 0
  %2258 = vmatpush2.bf16.msra.mxu0 0
  %2259 = vmatprep.subr.bf16.mxu0 0
  %2260 = vmatpush2.bf16.msra.mxu0 0
  %2261 = vmatprep.subr.bf16.mxu0 0
  %2262 = vmatpush2.bf16.msra.mxu0 0
  %2263 = vmatprep.mubr.bf16.mxu0 0
  %2264 = vmatmul.mubr.bf16.gmra.mxu0 %v1128
  %v2265 = vpop.f32.mrf.mxu0
  %v2266 = vadd.f32 0.0, %v2265
  %v2267 = vpop.f32.mrf.mxu0
  %v2268 = vpop.f32.mrf.mxu0
  %v2269 = vpop.f32.mrf.mxu0
  %2270 = vdwg.mxu0
  %v2287 = vunpack.c.l.b16 %v1295
  %v2288 = vunpack.c.l.b16 %v1296
  %v2289 = vunpack.c.l.b16 %v1297
  %v2290 = vunpack.c.l.b16 %v1298
  %v2291 = vunpack.c.l.b16 %v1299
  %v2292 = vunpack.c.l.b16 %v1300
  %v2293 = vunpack.c.l.b16 %v1301
  %v2294 = vunpack.c.l.b16 %v1302
  %v2295 = vunpack.c.l.b16 %v1303
  %v2296 = vunpack.c.l.b16 %v1304
  %v2297 = vunpack.c.l.b16 %v1305
  %v2298 = vunpack.c.l.b16 %v1306
  %v2299 = vunpack.c.l.b16 %v1307
  %v2300 = vunpack.c.l.b16 %v1308
  %v2301 = vunpack.c.l.b16 %v1309
  %v2302 = vunpack.c.l.b16 %v1310
  %v2303 = vpack.c.b16 %v2288, %v2287
  %v2304 = vpack.c.b16 %v2290, %v2289
  %v2305 = vpack.c.b16 %v2292, %v2291
  %v2306 = vpack.c.b16 %v2294, %v2293
  %v2307 = vpack.c.b16 %v2296, %v2295
  %v2308 = vpack.c.b16 %v2298, %v2297
  %v2309 = vpack.c.b16 %v2300, %v2299
  %v2310 = vpack.c.b16 %v2302, %v2301
  %2319 = vmatprep.subr.bf16.mxu0 0
  %2320 = vmatpush1.bf16.msra.mxu0 %v2310
  %2321 = vmatprep.subr.bf16.mxu0 0
  %2322 = vmatpush1.bf16.msra.mxu0 %v2309
  %2323 = vmatprep.subr.bf16.mxu0 0
  %2324 = vmatpush1.bf16.msra.mxu0 %v2308
  %2325 = vmatprep.subr.bf16.mxu0 0
  %2326 = vmatpush1.bf16.msra.mxu0 %v2307
  %2327 = vmatprep.subr.bf16.mxu0 0
  %2328 = vmatpush1.bf16.msra.mxu0 %v2306
  %2329 = vmatprep.subr.bf16.mxu0 0
  %2330 = vmatpush1.bf16.msra.mxu0 %v2305
  %2331 = vmatprep.subr.bf16.mxu0 0
  %2332 = vmatpush1.bf16.msra.mxu0 %v2304
  %2333 = vmatprep.subr.bf16.mxu0 0
  %2334 = vmatpush1.bf16.msra.mxu0 %v2303
  %2335 = vmatprep.subr.bf16.mxu0 0
  %2336 = vmatpush2.bf16.msra.mxu0 0
  %2337 = vmatprep.subr.bf16.mxu0 0
  %2338 = vmatpush2.bf16.msra.mxu0 0
  %2339 = vmatprep.subr.bf16.mxu0 0
  %2340 = vmatpush2.bf16.msra.mxu0 0
  %2341 = vmatprep.subr.bf16.mxu0 0
  %2342 = vmatpush2.bf16.msra.mxu0 0
  %2343 = vmatprep.subr.bf16.mxu0 0
  %2344 = vmatpush2.bf16.msra.mxu0 0
  %2345 = vmatprep.subr.bf16.mxu0 0
  %2346 = vmatpush2.bf16.msra.mxu0 0
  %2347 = vmatprep.subr.bf16.mxu0 0
  %2348 = vmatpush2.bf16.msra.mxu0 0
  %2349 = vmatprep.subr.bf16.mxu0 0
  %2350 = vmatpush2.bf16.msra.mxu0 0
  %2351 = vmatprep.mubr.bf16.mxu0 0
  %2352 = vmatmul.mubr.bf16.gmra.mxu0 %v1129
  %v2353 = vpop.f32.mrf.mxu0
  %v2354 = vadd.f32 0.0, %v2353
  %v2355 = vpop.f32.mrf.mxu0
  %v2356 = vpop.f32.mrf.mxu0
  %v2357 = vpop.f32.mrf.mxu0
  %2358 = vdwg.mxu0
  %v2375 = vunpack.c.l.b16 %v1311
  %v2376 = vunpack.c.l.b16 %v1312
  %v2377 = vunpack.c.l.b16 %v1313
  %v2378 = vunpack.c.l.b16 %v1314
  %v2379 = vunpack.c.l.b16 %v1315
  %v2380 = vunpack.c.l.b16 %v1316
  %v2381 = vunpack.c.l.b16 %v1317
  %v2382 = vunpack.c.l.b16 %v1318
  %v2383 = vunpack.c.l.b16 %v1319
  %v2384 = vunpack.c.l.b16 %v1320
  %v2385 = vunpack.c.l.b16 %v1321
  %v2386 = vunpack.c.l.b16 %v1322
  %v2387 = vunpack.c.l.b16 %v1323
  %v2388 = vunpack.c.l.b16 %v1324
  %v2389 = vunpack.c.l.b16 %v1325
  %v2390 = vunpack.c.l.b16 %v1326
  %v2391 = vpack.c.b16 %v2376, %v2375
  %v2392 = vpack.c.b16 %v2378, %v2377
  %v2393 = vpack.c.b16 %v2380, %v2379
  %v2394 = vpack.c.b16 %v2382, %v2381
  %v2395 = vpack.c.b16 %v2384, %v2383
  %v2396 = vpack.c.b16 %v2386, %v2385
  %v2397 = vpack.c.b16 %v2388, %v2387
  %v2398 = vpack.c.b16 %v2390, %v2389
  %2407 = vmatprep.subr.bf16.mxu0 0
  %2408 = vmatpush1.bf16.msra.mxu0 %v2398
  %2409 = vmatprep.subr.bf16.mxu0 0
  %2410 = vmatpush1.bf16.msra.mxu0 %v2397
  %2411 = vmatprep.subr.bf16.mxu0 0
  %2412 = vmatpush1.bf16.msra.mxu0 %v2396
  %2413 = vmatprep.subr.bf16.mxu0 0
  %2414 = vmatpush1.bf16.msra.mxu0 %v2395
  %2415 = vmatprep.subr.bf16.mxu0 0
  %2416 = vmatpush1.bf16.msra.mxu0 %v2394
  %2417 = vmatprep.subr.bf16.mxu0 0
  %2418 = vmatpush1.bf16.msra.mxu0 %v2393
  %2419 = vmatprep.subr.bf16.mxu0 0
  %2420 = vmatpush1.bf16.msra.mxu0 %v2392
  %2421 = vmatprep.subr.bf16.mxu0 0
  %2422 = vmatpush1.bf16.msra.mxu0 %v2391
  %2423 = vmatprep.subr.bf16.mxu0 0
  %2424 = vmatpush2.bf16.msra.mxu0 0
  %2425 = vmatprep.subr.bf16.mxu0 0
  %2426 = vmatpush2.bf16.msra.mxu0 0
  %2427 = vmatprep.subr.bf16.mxu0 0
  %2428 = vmatpush2.bf16.msra.mxu0 0
  %2429 = vmatprep.subr.bf16.mxu0 0
  %2430 = vmatpush2.bf16.msra.mxu0 0
  %2431 = vmatprep.subr.bf16.mxu0 0
  %2432 = vmatpush2.bf16.msra.mxu0 0
  %2433 = vmatprep.subr.bf16.mxu0 0
  %2434 = vmatpush2.bf16.msra.mxu0 0
  %2435 = vmatprep.subr.bf16.mxu0 0
  %2436 = vmatpush2.bf16.msra.mxu0 0
  %2437 = vmatprep.subr.bf16.mxu0 0
  %2438 = vmatpush2.bf16.msra.mxu0 0
  %2439 = vmatprep.mubr.bf16.mxu0 0
  %2440 = vmatmul.mubr.bf16.gmra.mxu0 %v1130
  %v2441 = vpop.f32.mrf.mxu0
  %v2442 = vadd.f32 0.0, %v2441
  %v2443 = vpop.f32.mrf.mxu0
  %v2444 = vpop.f32.mrf.mxu0
  %v2445 = vpop.f32.mrf.mxu0
  %2446 = vdwg.mxu0
  %v2463 = vunpack.c.l.b16 %v1327
  %v2464 = vunpack.c.l.b16 %v1328
  %v2465 = vunpack.c.l.b16 %v1329
  %v2466 = vunpack.c.l.b16 %v1330
  %v2467 = vunpack.c.l.b16 %v1331
  %v2468 = vunpack.c.l.b16 %v1332
  %v2469 = vunpack.c.l.b16 %v1333
  %v2470 = vunpack.c.l.b16 %v1334
  %v2471 = vunpack.c.l.b16 %v1335
  %v2472 = vunpack.c.l.b16 %v1336
  %v2473 = vunpack.c.l.b16 %v1337
  %v2474 = vunpack.c.l.b16 %v1338
  %v2475 = vunpack.c.l.b16 %v1339
  %v2476 = vunpack.c.l.b16 %v1340
  %v2477 = vunpack.c.l.b16 %v1341
  %v2478 = vunpack.c.l.b16 %v1342
  %v2479 = vpack.c.b16 %v2464, %v2463
  %v2480 = vpack.c.b16 %v2466, %v2465
  %v2481 = vpack.c.b16 %v2468, %v2467
  %v2482 = vpack.c.b16 %v2470, %v2469
  %v2483 = vpack.c.b16 %v2472, %v2471
  %v2484 = vpack.c.b16 %v2474, %v2473
  %v2485 = vpack.c.b16 %v2476, %v2475
  %v2486 = vpack.c.b16 %v2478, %v2477
  %2495 = vmatprep.subr.bf16.mxu0 0
  %2496 = vmatpush1.bf16.msra.mxu0 %v2486
  %2497 = vmatprep.subr.bf16.mxu0 0
  %2498 = vmatpush1.bf16.msra.mxu0 %v2485
  %2499 = vmatprep.subr.bf16.mxu0 0
  %2500 = vmatpush1.bf16.msra.mxu0 %v2484
  %2501 = vmatprep.subr.bf16.mxu0 0
  %2502 = vmatpush1.bf16.msra.mxu0 %v2483
  %2503 = vmatprep.subr.bf16.mxu0 0
  %2504 = vmatpush1.bf16.msra.mxu0 %v2482
  %2505 = vmatprep.subr.bf16.mxu0 0
  %2506 = vmatpush1.bf16.msra.mxu0 %v2481
  %2507 = vmatprep.subr.bf16.mxu0 0
  %2508 = vmatpush1.bf16.msra.mxu0 %v2480
  %2509 = vmatprep.subr.bf16.mxu0 0
  %2510 = vmatpush1.bf16.msra.mxu0 %v2479
  %2511 = vmatprep.subr.bf16.mxu0 0
  %2512 = vmatpush2.bf16.msra.mxu0 0
  %2513 = vmatprep.subr.bf16.mxu0 0
  %2514 = vmatpush2.bf16.msra.mxu0 0
  %2515 = vmatprep.subr.bf16.mxu0 0
  %2516 = vmatpush2.bf16.msra.mxu0 0
  %2517 = vmatprep.subr.bf16.mxu0 0
  %2518 = vmatpush2.bf16.msra.mxu0 0
  %2519 = vmatprep.subr.bf16.mxu0 0
  %2520 = vmatpush2.bf16.msra.mxu0 0
  %2521 = vmatprep.subr.bf16.mxu0 0
  %2522 = vmatpush2.bf16.msra.mxu0 0
  %2523 = vmatprep.subr.bf16.mxu0 0
  %2524 = vmatpush2.bf16.msra.mxu0 0
  %2525 = vmatprep.subr.bf16.mxu0 0
  %2526 = vmatpush2.bf16.msra.mxu0 0
  %2527 = vmatprep.mubr.bf16.mxu0 0
  %2528 = vmatmul.mubr.bf16.gmra.mxu0 %v1131
  %v2529 = vpop.f32.mrf.mxu0
  %v2530 = vadd.f32 0.0, %v2529
  %v2531 = vpop.f32.mrf.mxu0
  %v2532 = vpop.f32.mrf.mxu0
  %v2533 = vpop.f32.mrf.mxu0
  %2534 = vdwg.mxu0
  %v2551 = vunpack.c.l.b16 %v1343
  %v2552 = vunpack.c.l.b16 %v1344
  %v2553 = vunpack.c.l.b16 %v1345
  %v2554 = vunpack.c.l.b16 %v1346
  %v2555 = vunpack.c.l.b16 %v1347
  %v2556 = vunpack.c.l.b16 %v1348
  %v2557 = vunpack.c.l.b16 %v1349
  %v2558 = vunpack.c.l.b16 %v1350
  %v2559 = vunpack.c.l.b16 %v1351
  %v2560 = vunpack.c.l.b16 %v1352
  %v2561 = vunpack.c.l.b16 %v1353
  %v2562 = vunpack.c.l.b16 %v1354
  %v2563 = vunpack.c.l.b16 %v1355
  %v2564 = vunpack.c.l.b16 %v1356
  %v2565 = vunpack.c.l.b16 %v1357
  %v2566 = vunpack.c.l.b16 %v1358
  %v2567 = vpack.c.b16 %v2552, %v2551
  %v2568 = vpack.c.b16 %v2554, %v2553
  %v2569 = vpack.c.b16 %v2556, %v2555
  %v2570 = vpack.c.b16 %v2558, %v2557
  %v2571 = vpack.c.b16 %v2560, %v2559
  %v2572 = vpack.c.b16 %v2562, %v2561
  %v2573 = vpack.c.b16 %v2564, %v2563
  %v2574 = vpack.c.b16 %v2566, %v2565
  %2583 = vmatprep.subr.bf16.mxu0 0
  %2584 = vmatpush1.bf16.msra.mxu0 %v2574
  %2585 = vmatprep.subr.bf16.mxu0 0
  %2586 = vmatpush1.bf16.msra.mxu0 %v2573
  %2587 = vmatprep.subr.bf16.mxu0 0
  %2588 = vmatpush1.bf16.msra.mxu0 %v2572
  %2589 = vmatprep.subr.bf16.mxu0 0
  %2590 = vmatpush1.bf16.msra.mxu0 %v2571
  %2591 = vmatprep.subr.bf16.mxu0 0
  %2592 = vmatpush1.bf16.msra.mxu0 %v2570
  %2593 = vmatprep.subr.bf16.mxu0 0
  %2594 = vmatpush1.bf16.msra.mxu0 %v2569
  %2595 = vmatprep.subr.bf16.mxu0 0
  %2596 = vmatpush1.bf16.msra.mxu0 %v2568
  %2597 = vmatprep.subr.bf16.mxu0 0
  %2598 = vmatpush1.bf16.msra.mxu0 %v2567
  %2599 = vmatprep.subr.bf16.mxu0 0
  %2600 = vmatpush2.bf16.msra.mxu0 0
  %2601 = vmatprep.subr.bf16.mxu0 0
  %2602 = vmatpush2.bf16.msra.mxu0 0
  %2603 = vmatprep.subr.bf16.mxu0 0
  %2604 = vmatpush2.bf16.msra.mxu0 0
  %2605 = vmatprep.subr.bf16.mxu0 0
  %2606 = vmatpush2.bf16.msra.mxu0 0
  %2607 = vmatprep.subr.bf16.mxu0 0
  %2608 = vmatpush2.bf16.msra.mxu0 0
  %2609 = vmatprep.subr.bf16.mxu0 0
  %2610 = vmatpush2.bf16.msra.mxu0 0
  %2611 = vmatprep.subr.bf16.mxu0 0
  %2612 = vmatpush2.bf16.msra.mxu0 0
  %2613 = vmatprep.subr.bf16.mxu0 0
  %2614 = vmatpush2.bf16.msra.mxu0 0
  %2615 = vmatprep.mubr.bf16.mxu0 0
  %2616 = vmatmul.mubr.bf16.gmra.mxu0 %v1132
  %v2617 = vpop.f32.mrf.mxu0
  %v2618 = vadd.f32 0.0, %v2617
  %v2619 = vpop.f32.mrf.mxu0
  %v2620 = vpop.f32.mrf.mxu0
  %v2621 = vpop.f32.mrf.mxu0
  %2622 = vdwg.mxu0
  %v2639 = vunpack.c.l.b16 %v1359
  %v2640 = vunpack.c.l.b16 %v1360
  %v2641 = vunpack.c.l.b16 %v1361
  %v2642 = vunpack.c.l.b16 %v1362
  %v2643 = vunpack.c.l.b16 %v1363
  %v2644 = vunpack.c.l.b16 %v1364
  %v2645 = vunpack.c.l.b16 %v1365
  %v2646 = vunpack.c.l.b16 %v1366
  %v2647 = vunpack.c.l.b16 %v1367
  %v2648 = vunpack.c.l.b16 %v1368
  %v2649 = vunpack.c.l.b16 %v1369
  %v2650 = vunpack.c.l.b16 %v1370
  %v2651 = vunpack.c.l.b16 %v1371
  %v2652 = vunpack.c.l.b16 %v1372
  %v2653 = vunpack.c.l.b16 %v1373
  %v2654 = vunpack.c.l.b16 %v1374
  %v2655 = vpack.c.b16 %v2640, %v2639
  %v2656 = vpack.c.b16 %v2642, %v2641
  %v2657 = vpack.c.b16 %v2644, %v2643
  %v2658 = vpack.c.b16 %v2646, %v2645
  %v2659 = vpack.c.b16 %v2648, %v2647
  %v2660 = vpack.c.b16 %v2650, %v2649
  %v2661 = vpack.c.b16 %v2652, %v2651
  %v2662 = vpack.c.b16 %v2654, %v2653
  %2671 = vmatprep.subr.bf16.mxu0 0
  %2672 = vmatpush1.bf16.msra.mxu0 %v2662
  %2673 = vmatprep.subr.bf16.mxu0 0
  %2674 = vmatpush1.bf16.msra.mxu0 %v2661
  %2675 = vmatprep.subr.bf16.mxu0 0
  %2676 = vmatpush1.bf16.msra.mxu0 %v2660
  %2677 = vmatprep.subr.bf16.mxu0 0
  %2678 = vmatpush1.bf16.msra.mxu0 %v2659
  %2679 = vmatprep.subr.bf16.mxu0 0
  %2680 = vmatpush1.bf16.msra.mxu0 %v2658
  %2681 = vmatprep.subr.bf16.mxu0 0
  %2682 = vmatpush1.bf16.msra.mxu0 %v2657
  %2683 = vmatprep.subr.bf16.mxu0 0
  %2684 = vmatpush1.bf16.msra.mxu0 %v2656
  %2685 = vmatprep.subr.bf16.mxu0 0
  %2686 = vmatpush1.bf16.msra.mxu0 %v2655
  %2687 = vmatprep.subr.bf16.mxu0 0
  %2688 = vmatpush2.bf16.msra.mxu0 0
  %2689 = vmatprep.subr.bf16.mxu0 0
  %2690 = vmatpush2.bf16.msra.mxu0 0
  %2691 = vmatprep.subr.bf16.mxu0 0
  %2692 = vmatpush2.bf16.msra.mxu0 0
  %2693 = vmatprep.subr.bf16.mxu0 0
  %2694 = vmatpush2.bf16.msra.mxu0 0
  %2695 = vmatprep.subr.bf16.mxu0 0
  %2696 = vmatpush2.bf16.msra.mxu0 0
  %2697 = vmatprep.subr.bf16.mxu0 0
  %2698 = vmatpush2.bf16.msra.mxu0 0
  %2699 = vmatprep.subr.bf16.mxu0 0
  %2700 = vmatpush2.bf16.msra.mxu0 0
  %2701 = vmatprep.subr.bf16.mxu0 0
  %2702 = vmatpush2.bf16.msra.mxu0 0
  %2703 = vmatprep.mubr.bf16.mxu0 0
  %2704 = vmatmul.mubr.bf16.gmra.mxu0 %v1133
  %v2705 = vpop.f32.mrf.mxu0
  %v2706 = vadd.f32 0.0, %v2705
  %v2707 = vpop.f32.mrf.mxu0
  %v2708 = vpop.f32.mrf.mxu0
  %v2709 = vpop.f32.mrf.mxu0
  %2710 = vdwg.mxu0
  %v2727 = vunpack.c.l.b16 %v1375
  %v2728 = vunpack.c.l.b16 %v1376
  %v2729 = vunpack.c.l.b16 %v1377
  %v2730 = vunpack.c.l.b16 %v1378
  %v2731 = vunpack.c.l.b16 %v1379
  %v2732 = vunpack.c.l.b16 %v1380
  %v2733 = vunpack.c.l.b16 %v1381
  %v2734 = vunpack.c.l.b16 %v1382
  %v2735 = vunpack.c.l.b16 %v1383
  %v2736 = vunpack.c.l.b16 %v1384
  %v2737 = vunpack.c.l.b16 %v1385
  %v2738 = vunpack.c.l.b16 %v1386
  %v2739 = vunpack.c.l.b16 %v1387
  %v2740 = vunpack.c.l.b16 %v1388
  %v2741 = vunpack.c.l.b16 %v1389
  %v2742 = vunpack.c.l.b16 %v1390
  %v2743 = vpack.c.b16 %v2728, %v2727
  %v2744 = vpack.c.b16 %v2730, %v2729
  %v2745 = vpack.c.b16 %v2732, %v2731
  %v2746 = vpack.c.b16 %v2734, %v2733
  %v2747 = vpack.c.b16 %v2736, %v2735
  %v2748 = vpack.c.b16 %v2738, %v2737
  %v2749 = vpack.c.b16 %v2740, %v2739
  %v2750 = vpack.c.b16 %v2742, %v2741
  %2759 = vmatprep.subr.bf16.mxu0 0
  %2760 = vmatpush1.bf16.msra.mxu0 %v2750
  %2761 = vmatprep.subr.bf16.mxu0 0
  %2762 = vmatpush1.bf16.msra.mxu0 %v2749
  %2763 = vmatprep.subr.bf16.mxu0 0
  %2764 = vmatpush1.bf16.msra.mxu0 %v2748
  %2765 = vmatprep.subr.bf16.mxu0 0
  %2766 = vmatpush1.bf16.msra.mxu0 %v2747
  %2767 = vmatprep.subr.bf16.mxu0 0
  %2768 = vmatpush1.bf16.msra.mxu0 %v2746
  %2769 = vmatprep.subr.bf16.mxu0 0
  %2770 = vmatpush1.bf16.msra.mxu0 %v2745
  %2771 = vmatprep.subr.bf16.mxu0 0
  %2772 = vmatpush1.bf16.msra.mxu0 %v2744
  %2773 = vmatprep.subr.bf16.mxu0 0
  %2774 = vmatpush1.bf16.msra.mxu0 %v2743
  %2775 = vmatprep.subr.bf16.mxu0 0
  %2776 = vmatpush2.bf16.msra.mxu0 0
  %2777 = vmatprep.subr.bf16.mxu0 0
  %2778 = vmatpush2.bf16.msra.mxu0 0
  %2779 = vmatprep.subr.bf16.mxu0 0
  %2780 = vmatpush2.bf16.msra.mxu0 0
  %2781 = vmatprep.subr.bf16.mxu0 0
  %2782 = vmatpush2.bf16.msra.mxu0 0
  %2783 = vmatprep.subr.bf16.mxu0 0
  %2784 = vmatpush2.bf16.msra.mxu0 0
  %2785 = vmatprep.subr.bf16.mxu0 0
  %2786 = vmatpush2.bf16.msra.mxu0 0
  %2787 = vmatprep.subr.bf16.mxu0 0
  %2788 = vmatpush2.bf16.msra.mxu0 0
  %2789 = vmatprep.subr.bf16.mxu0 0
  %2790 = vmatpush2.bf16.msra.mxu0 0
  %2791 = vmatprep.mubr.bf16.mxu0 0
  %2792 = vmatmul.mubr.bf16.gmra.mxu0 %v1134
  %v2793 = vpop.f32.mrf.mxu0
  %v2794 = vadd.f32 0.0, %v2793
  %v2795 = vpop.f32.mrf.mxu0
  %v2796 = vpop.f32.mrf.mxu0
  %v2797 = vpop.f32.mrf.mxu0
  %2798 = vdwg.mxu0
  %v2799 = vadd.f32 %v1474, %v1562
  %v2800 = vadd.f32 %v2799, %v1650
  %v2801 = vadd.f32 %v2800, %v1738
  %v2802 = vadd.f32 %v2801, %v1826
  %v2803 = vadd.f32 %v2802, %v1914
  %v2804 = vadd.f32 %v2803, %v2002
  %v2805 = vadd.f32 %v2804, %v2090
  %v2806 = vadd.f32 %v2805, %v2178
  %v2807 = vadd.f32 %v2806, %v2266
  %v2808 = vadd.f32 %v2807, %v2354
  %v2809 = vadd.f32 %v2808, %v2442
  %v2810 = vadd.f32 %v2809, %v2530
  %v2811 = vadd.f32 %v2810, %v2618
  %v2812 = vadd.f32 %v2811, %v2706
  %v2813 = vadd.f32 %v2812, %v2794
  %v2814 = vld [vmem:[%s6] sm:$0x1]
  %v2816 = vlaneseq
  %v2817 = vshrl.u32 %v2816, 7
  %v2818 = vsub.s32 0, %v2817
  %v2819 = vrot.slane %v2814, %v2818
  %v2821 = vadd.f32 %v2813, %v2819
  %v2822 = vmax.f32 %v2821, 0.0
  %v2823 = vpack.c.bf16 %v2822, %v2822
  %v2824 = vld [vmem:[%s7] sm:$0xf]
  %v2825 = vld [vmem:[%s7 + $0x4] sm:$0xf]
  %v2826 = vld [vmem:[%s7 + $0x8] sm:$0xf]
  %v2827 = vld [vmem:[%s7 + $0xc] sm:$0xf]
  %v2828 = vld [vmem:[%s7 + $0x10] sm:$0xf]
  %v2829 = vld [vmem:[%s7 + $0x14] sm:$0xf]
  %v2830 = vld [vmem:[%s7 + $0x18] sm:$0xf]
  %v2831 = vld [vmem:[%s7 + $0x1c] sm:$0xf]
  %v2832 = vld [vmem:[%s7 + $0x20] sm:$0xf]
  %v2833 = vld [vmem:[%s7 + $0x24] sm:$0xf]
  %v2834 = vld [vmem:[%s7 + $0x28] sm:$0xf]
  %v2835 = vld [vmem:[%s7 + $0x2c] sm:$0xf]
  %v2836 = vld [vmem:[%s7 + $0x30] sm:$0xf]
  %v2837 = vld [vmem:[%s7 + $0x34] sm:$0xf]
  %v2838 = vld [vmem:[%s7 + $0x38] sm:$0xf]
  %v2839 = vld [vmem:[%s7 + $0x3c] sm:$0xf]
  %v2840 = vld [vmem:[%s8] sm:$0x1]
  %v2842 = vlaneseq
  %v2843 = vshrl.u32 %v2842, 7
  %v2844 = vsub.s32 0, %v2843
  %v2845 = vrot.slane %v2840, %v2844
  %v2863 = vunpack.c.l.b16 %v2824
  %v2864 = vunpack.c.l.b16 %v2825
  %v2865 = vunpack.c.l.b16 %v2826
  %v2866 = vunpack.c.l.b16 %v2827
  %v2867 = vunpack.c.l.b16 %v2828
  %v2868 = vunpack.c.l.b16 %v2829
  %v2869 = vunpack.c.l.b16 %v2830
  %v2870 = vunpack.c.l.b16 %v2831
  %v2871 = vunpack.c.l.b16 %v2832
  %v2872 = vunpack.c.l.b16 %v2833
  %v2873 = vunpack.c.l.b16 %v2834
  %v2874 = vunpack.c.l.b16 %v2835
  %v2875 = vunpack.c.l.b16 %v2836
  %v2876 = vunpack.c.l.b16 %v2837
  %v2877 = vunpack.c.l.b16 %v2838
  %v2878 = vunpack.c.l.b16 %v2839
  %v2879 = vpack.c.b16 %v2864, %v2863
  %v2880 = vpack.c.b16 %v2866, %v2865
  %v2881 = vpack.c.b16 %v2868, %v2867
  %v2882 = vpack.c.b16 %v2870, %v2869
  %v2883 = vpack.c.b16 %v2872, %v2871
  %v2884 = vpack.c.b16 %v2874, %v2873
  %v2885 = vpack.c.b16 %v2876, %v2875
  %v2886 = vpack.c.b16 %v2878, %v2877
  %2895 = vmatprep.subr.bf16.mxu0 0
  %2896 = vmatpush1.bf16.msra.mxu0 %v2886
  %2897 = vmatprep.subr.bf16.mxu0 0
  %2898 = vmatpush1.bf16.msra.mxu0 %v2885
  %2899 = vmatprep.subr.bf16.mxu0 0
  %2900 = vmatpush1.bf16.msra.mxu0 %v2884
  %2901 = vmatprep.subr.bf16.mxu0 0
  %2902 = vmatpush1.bf16.msra.mxu0 %v2883
  %2903 = vmatprep.subr.bf16.mxu0 0
  %2904 = vmatpush1.bf16.msra.mxu0 %v2882
  %2905 = vmatprep.subr.bf16.mxu0 0
  %2906 = vmatpush1.bf16.msra.mxu0 %v2881
  %2907 = vmatprep.subr.bf16.mxu0 0
  %2908 = vmatpush1.bf16.msra.mxu0 %v2880
  %2909 = vmatprep.subr.bf16.mxu0 0
  %2910 = vmatpush1.bf16.msra.mxu0 %v2879
  %2911 = vmatprep.subr.bf16.mxu0 0
  %2912 = vmatpush2.bf16.msra.mxu0 0
  %2913 = vmatprep.subr.bf16.mxu0 0
  %2914 = vmatpush2.bf16.msra.mxu0 0
  %2915 = vmatprep.subr.bf16.mxu0 0
  %2916 = vmatpush2.bf16.msra.mxu0 0
  %2917 = vmatprep.subr.bf16.mxu0 0
  %2918 = vmatpush2.bf16.msra.mxu0 0
  %2919 = vmatprep.subr.bf16.mxu0 0
  %2920 = vmatpush2.bf16.msra.mxu0 0
  %2921 = vmatprep.subr.bf16.mxu0 0
  %2922 = vmatpush2.bf16.msra.mxu0 0
  %2923 = vmatprep.subr.bf16.mxu0 0
  %2924 = vmatpush2.bf16.msra.mxu0 0
  %2925 = vmatprep.subr.bf16.mxu0 0
  %2926 = vmatpush2.bf16.msra.mxu0 0
  %2927 = vmatprep.mubr.bf16.mxu0 0
  %2928 = vmatmul.mubr.bf16.gmra.mxu0 %v2823
  %v2929 = vpop.f32.mrf.mxu0
  %v2930 = vadd.f32 %v2845, %v2929
  %v2931 = vpop.f32.mrf.mxu0
  %v2932 = vpop.f32.mrf.mxu0
  %v2933 = vpop.f32.mrf.mxu0
  %2934 = vdwg.mxu0
  %2935 = vst [vmem:[%s9] sm:$0xff] %v2930
  // Predicated region
  $region38: #{my_torch_network_forward.1} parent=0 // pred_check
    _
  $region39: #{my_torch_network_forward.1} parent=0 // pred_check_branch
    %2937 = sbr.rel (0) target = $region41
  $region40: #{my_torch_network_forward.1} parent=0 // pred_region
    _
  $region41: #{my_torch_network_forward.1} parent=0 // pred_fallthru
    _
  // Predicated region
  $region42: #{my_torch_network_forward.1} parent=0 // pred_check
    _
  $region43: #{my_torch_network_forward.1} parent=0 // pred_check_branch
    %2939 = sbr.rel (0) target = $region45
  $region44: #{my_torch_network_forward.1} parent=0 // pred_region
    _
  $region45: #{my_torch_network_forward.1} parent=0 // pred_fallthru
    _

</llo_original>
